<compile_context>
chip_gen: v7x
topology: tpu7x:2x2x1
jax: 0.10.0
libtpu: 0.0.40
codegen_flags: <defaults>
</compile_context>

<pallas_src>
import functools

import jax
import jax.numpy as jnp
from jax.experimental import pallas as pl
from jax.experimental.pallas import tpu as pltpu


def _head_kernel(xf_ref, wc_ref, bc_ref, w1_ref, b1_ref, w2_ref, b2_ref,
                 conv_ref, fc_ref, pooled_ref, *, c, hw, co):
    inv_hw = 1.0 / hw

    xfb = xf_ref[...]                                    # (TN, C*HW) bf16

    # ---- 1x1 conv (+bias, relu) on the VPU -------------------------------
    # conv[n, d, h] = relu( sum_c x[n, c, h] * wc[c, d] + bc[d] )
    # C/CO are tiny here, so an unrolled scalar-broadcast MAC beats the MXU.
    # Per-channel lane slices of the flat row (offsets are multiples of 256).
    xcs = [xfb[:, cc * hw:(cc + 1) * hw].astype(jnp.float32) for cc in range(c)]
    for d in range(co):
        acc = xcs[0] * wc_ref[0, d]                      # scalar from SMEM
        for cc in range(1, c):
            acc = acc + xcs[cc] * wc_ref[cc, d]
        conv_d = jnp.maximum(acc + bc_ref[0, d], 0.0)    # (TN, HW) f32
        # lane-dense store: lane width HW = 256 (multiple of 128), NCHW order.
        conv_ref[:, d * hw:(d + 1) * hw] = conv_d
        # spatial sum for the pooled path: lane reduce, no reshape.
        pooled_ref[:, d:d + 1] = jnp.sum(conv_d, axis=1, keepdims=True)

    # ---- fc stack: relu(fc1) -> relu(fc2); bf16 MXU matmuls, f32 accum ----
    h = jnp.dot(xfb, w1_ref[...], preferred_element_type=jnp.float32) + b1_ref[...]
    h = jnp.maximum(h, 0.0)
    h = jnp.dot(h.astype(jnp.bfloat16), w2_ref[...],
                preferred_element_type=jnp.float32) + b2_ref[...]
    h = jnp.maximum(h, 0.0)

    # ---- x_fc + x_conv.mean(dim=[2,3]); 1/HW folded as a constant multiply.
    # (fc output lane width F2=16 < 128 -> masked store, acceptable: tiny.)
    fc_ref[...] = h + pooled_ref[...] * inv_hw


def fast_rcnn_conv_pooling_head(x, params, *, box_tile=16):
    """x: (N, C, H, W) float32 (NCHW, like PyTorch). Returns (x_conv, x_fc)."""
    n, c, h, w = x.shape
    wc, bc, w1, b1, w2, b2 = params
    co = wc.shape[1]
    f1 = w1.shape[1]
    f2 = w2.shape[1]
    hw = h * w
    assert n % box_tile == 0

    # Zero-copy NCHW flatten (no transpose): feeds both the conv path
    # (per-channel lane slices) and the fc path. bf16 halves HBM read traffic.
    xf = x.reshape(n, c * hw).astype(jnp.bfloat16)
    w1b = w1.astype(jnp.bfloat16)
    w2b = w2.astype(jnp.bfloat16)

    kernel = functools.partial(_head_kernel, c=c, hw=hw, co=co)

    conv_flat, fc_out = pl.pallas_call(
        kernel,
        grid=(n // box_tile,),
        in_specs=[
            # x tile: streamed / double-buffered over the box dimension.
            pl.BlockSpec((box_tile, c * hw), lambda i: (i, 0)),
            # tiny conv weight / bias tables -> SMEM for scalar broadcasts.
            pl.BlockSpec(memory_space=pltpu.MemorySpace.SMEM),   # wc (C, CO)
            pl.BlockSpec(memory_space=pltpu.MemorySpace.SMEM),   # bc (1, CO)
            # fc weights/biases: constant index_map -> stay VMEM-resident.
            pl.BlockSpec((c * hw, f1), lambda i: (0, 0)),        # w1 (bf16)
            pl.BlockSpec((1, f1), lambda i: (0, 0)),             # b1 (f32)
            pl.BlockSpec((f1, f2), lambda i: (0, 0)),            # w2 (bf16)
            pl.BlockSpec((1, f2), lambda i: (0, 0)),             # b2 (f32)
        ],
        out_specs=(
            # conv output written lane-dense in NCHW order as (N, CO*HW).
            pl.BlockSpec((box_tile, co * hw), lambda i: (i, 0)),
            pl.BlockSpec((box_tile, f2), lambda i: (i, 0)),
        ),
        out_shape=(
            jax.ShapeDtypeStruct((n, co * hw), jnp.float32),
            jax.ShapeDtypeStruct((n, f2), jnp.float32),
        ),
        scratch_shapes=[pltpu.VMEM((box_tile, co), jnp.float32)],  # pooled sums
        compiler_params=pltpu.CompilerParams(
            dimension_semantics=("parallel",),        # box dim -> v7x megacore
            vmem_limit_bytes=32 * 1024 * 1024,
        ),
    )(xf, wc, bc, w1b, b1, w2b, b2)

    # Free row-major reshape back to PyTorch NCHW (no transpose).
    x_conv = conv_flat.reshape(n, co, h, w)
    return x_conv, fc_out


def init_params(key, c, chw, conv_dim, fc_dims):
    """Synthetic init mirroring the module's parameter shapes.
    Conv2d(k=1): weight (CO, C, 1, 1) -> stored transposed as (C, CO);
    Linear: weight (out, in) -> stored transposed as (in, out)."""
    k = jax.random.split(key, 3)
    wc = jax.random.normal(k[0], (c, conv_dim), jnp.float32) * (2.0 / c) ** 0.5
    bc = jnp.zeros((1, conv_dim), jnp.float32)
    f1, f2 = fc_dims
    w1 = jax.random.normal(k[1], (chw, f1), jnp.float32) * (1.0 / chw) ** 0.5
    b1 = jnp.zeros((1, f1), jnp.float32)
    w2 = jax.random.normal(k[2], (f1, f2), jnp.float32) * (1.0 / f1) ** 0.5
    b2 = jnp.zeros((1, f2), jnp.float32)
    return wc, bc, w1, b1, w2, b2


def reference(x, params):
    """Pure-JAX reference with the same dtype policy (bf16 x / fc weights,
    f32 accumulation, f32 conv weights) for an apples-to-apples check."""
    n, c, h, w = x.shape
    wc, bc, w1, b1, w2, b2 = params
    hw = h * w
    xb = x.astype(jnp.bfloat16)
    # conv path (f32 math on the bf16-rounded input)
    x3 = xb.astype(jnp.float32).reshape(n, c, hw)
    conv = jnp.einsum('nch,cd->ndh', x3, wc,
                      precision=jax.lax.Precision.HIGHEST) + bc[0][None, :, None]
    conv = jnp.maximum(conv, 0.0)                       # (n, co, hw)
    x_conv = conv.reshape(n, -1, h, w)
    # fc path
    xf = xb.reshape(n, c * hw)
    hid = jnp.dot(xf, w1.astype(jnp.bfloat16),
                  preferred_element_type=jnp.float32) + b1
    hid = jnp.maximum(hid, 0.0)
    hid = jnp.dot(hid.astype(jnp.bfloat16), w2.astype(jnp.bfloat16),
                  preferred_element_type=jnp.float32) + b2
    hid = jnp.maximum(hid, 0.0)
    x_fc = hid + jnp.mean(conv, axis=-1)
    return x_conv, x_fc


if __name__ == "__main__":
    # Small ROI-box-head shapes: 32 boxes, C=4, 16x16 pooled features.
    N, C, H, W = 32, 4, 16, 16
    CONV_DIM = 16                 # conv_dims = [16]
    FC_DIMS = (32, 16)            # fc_dims = [32, 16]; last fc dim == conv dim
                                  # (required for the `x + x_conv.mean([2,3])` add)

    key = jax.random.PRNGKey(0)
    kx, kp = jax.random.split(key)
    x = jax.random.normal(kx, (N, C, H, W), jnp.float32)
    params = init_params(kp, C, C * H * W, CONV_DIM, FC_DIMS)

    head = jax.jit(fast_rcnn_conv_pooling_head)
    x_conv, x_fc = head(x, params)
    jax.block_until_ready((x_conv, x_fc))

    r_conv, r_fc = reference(x, params)
    assert x_conv.shape == (N, CONV_DIM, H, W) and x_fc.shape == (N, FC_DIMS[-1])
    assert jnp.allclose(x_conv, r_conv, rtol=1e-2, atol=1e-2), \
        float(jnp.max(jnp.abs(x_conv - r_conv)))
    assert jnp.allclose(x_fc, r_fc, rtol=1e-2, atol=1e-2), \
        float(jnp.max(jnp.abs(x_fc - r_fc)))

    print("KERNEL_OK")
</pallas_src>

<mosaic_0001>
module attributes {stable_mosaic.version = 11 : i64} {
  func.func @_head_kernel(%arg0: i32, %arg1: memref<16x1024xbf16, #tpu.memory_space<vmem>>, %arg2: memref<4x16xf32, #tpu.memory_space<smem>>, %arg3: memref<1x16xf32, #tpu.memory_space<smem>>, %arg4: memref<1024x32xbf16, #tpu.memory_space<vmem>>, %arg5: memref<1x32xf32, #tpu.memory_space<vmem>>, %arg6: memref<32x16xbf16, #tpu.memory_space<vmem>>, %arg7: memref<1x16xf32, #tpu.memory_space<vmem>>, %arg8: memref<16x4096xf32, #tpu.memory_space<vmem>>, %arg9: memref<16x16xf32, #tpu.memory_space<vmem>>, %arg10: memref<16x16xf32, #tpu.memory_space<vmem>>) attributes {dimension_semantics = [#tpu.dimension_semantics<parallel>], iteration_bounds = array<i64: 2>, scalar_prefetch = 0 : i64, scratch_operands = 1 : i64, tpu.core_type = #tpu.core_type<tc>, window_params = [{transform_indices = @transform_0, window_bounds = array<i64: 16, 1024>}, {transform_indices = @transform_1, window_bounds = array<i64: 4, 16>}, {transform_indices = @transform_2, window_bounds = array<i64: 1, 16>}, {pipeline_mode = #tpu.pipeline_mode<synchronous>, transform_indices = @transform_3, window_bounds = array<i64: 1024, 32>}, {pipeline_mode = #tpu.pipeline_mode<synchronous>, transform_indices = @transform_4, window_bounds = array<i64: 1, 32>}, {pipeline_mode = #tpu.pipeline_mode<synchronous>, transform_indices = @transform_5, window_bounds = array<i64: 32, 16>}, {pipeline_mode = #tpu.pipeline_mode<synchronous>, transform_indices = @transform_6, window_bounds = array<i64: 1, 16>}, {transform_indices = @transform_7, window_bounds = array<i64: 16, 4096>}, {transform_indices = @transform_8, window_bounds = array<i64: 16, 16>}]} {
    %c0 = arith.constant 0 : index
    %c0_0 = arith.constant 0 : index
    %0 = vector.load %arg1[%c0, %c0_0] : memref<16x1024xbf16, #tpu.memory_space<vmem>>, vector<16x1024xbf16>
    %1 = vector.extract_strided_slice %0 {offsets = [0, 0], sizes = [16, 256], strides = [1, 1]} : vector<16x1024xbf16> to vector<16x256xbf16>
    %2 = arith.extf %1 : vector<16x256xbf16> to vector<16x256xf32>
    %3 = vector.extract_strided_slice %0 {offsets = [0, 256], sizes = [16, 256], strides = [1, 1]} : vector<16x1024xbf16> to vector<16x256xbf16>
    %4 = arith.extf %3 : vector<16x256xbf16> to vector<16x256xf32>
    %5 = vector.extract_strided_slice %0 {offsets = [0, 512], sizes = [16, 256], strides = [1, 1]} : vector<16x1024xbf16> to vector<16x256xbf16>
    %6 = arith.extf %5 : vector<16x256xbf16> to vector<16x256xf32>
    %7 = vector.extract_strided_slice %0 {offsets = [0, 768], sizes = [16, 256], strides = [1, 1]} : vector<16x1024xbf16> to vector<16x256xbf16>
    %8 = arith.extf %7 : vector<16x256xbf16> to vector<16x256xf32>
    %c0_1 = arith.constant 0 : index
    %c0_2 = arith.constant 0 : index
    %9 = memref.load %arg2[%c0_1, %c0_2] : memref<4x16xf32, #tpu.memory_space<smem>>
    %10 = vector.broadcast %9 : f32 to vector<16x256xf32>
    %11 = arith.mulf %2, %10 : vector<16x256xf32>
    %c1 = arith.constant 1 : index
    %c0_3 = arith.constant 0 : index
    %12 = memref.load %arg2[%c1, %c0_3] : memref<4x16xf32, #tpu.memory_space<smem>>
    %13 = vector.broadcast %12 : f32 to vector<16x256xf32>
    %14 = arith.mulf %4, %13 : vector<16x256xf32>
    %15 = arith.addf %11, %14 : vector<16x256xf32>
    %c2 = arith.constant 2 : index
    %c0_4 = arith.constant 0 : index
    %16 = memref.load %arg2[%c2, %c0_4] : memref<4x16xf32, #tpu.memory_space<smem>>
    %17 = vector.broadcast %16 : f32 to vector<16x256xf32>
    %18 = arith.mulf %6, %17 : vector<16x256xf32>
    %19 = arith.addf %15, %18 : vector<16x256xf32>
    %c3 = arith.constant 3 : index
    %c0_5 = arith.constant 0 : index
    %20 = memref.load %arg2[%c3, %c0_5] : memref<4x16xf32, #tpu.memory_space<smem>>
    %21 = vector.broadcast %20 : f32 to vector<16x256xf32>
    %22 = arith.mulf %8, %21 : vector<16x256xf32>
    %23 = arith.addf %19, %22 : vector<16x256xf32>
    %c0_6 = arith.constant 0 : index
    %c0_7 = arith.constant 0 : index
    %24 = memref.load %arg3[%c0_6, %c0_7] : memref<1x16xf32, #tpu.memory_space<smem>>
    %25 = vector.broadcast %24 : f32 to vector<16x256xf32>
    %26 = arith.addf %23, %25 : vector<16x256xf32>
    %cst = arith.constant 0.000000e+00 : f32
    %27 = vector.broadcast %cst : f32 to vector<16x256xf32>
    %28 = arith.maximumf %26, %27 : vector<16x256xf32>
    %c0_8 = arith.constant 0 : index
    %c0_9 = arith.constant 0 : index
    %29 = vector.load %arg8[%c0_8, %c0_9] : memref<16x4096xf32, #tpu.memory_space<vmem>>, vector<16x256xf32>
    tpu.vector_store %arg8[%c0_8, %c0_9], %28 {strides = array<i32>} : memref<16x4096xf32, #tpu.memory_space<vmem>>, vector<16x256xf32>,
    %cst_10 = arith.constant dense<0.000000e+00> : vector<16xf32>
    %30 = vector.multi_reduction <add>, %28, %cst_10 [1] : vector<16x256xf32> to vector<16xf32>
    %31 = vector.shape_cast %30 : vector<16xf32> to vector<16x1xf32>
    %c0_11 = arith.constant 0 : index
    %c0_12 = arith.constant 0 : index
    %32 = vector.load %arg10[%c0_11, %c0_12] : memref<16x16xf32, #tpu.memory_space<vmem>>, vector<16x1xf32>
    tpu.vector_store %arg10[%c0_11, %c0_12], %31 {strides = array<i32>} : memref<16x16xf32, #tpu.memory_space<vmem>>, vector<16x1xf32>,
    %c0_13 = arith.constant 0 : index
    %c1_14 = arith.constant 1 : index
    %33 = memref.load %arg2[%c0_13, %c1_14] : memref<4x16xf32, #tpu.memory_space<smem>>
    %34 = vector.broadcast %33 : f32 to vector<16x256xf32>
    %35 = arith.mulf %2, %34 : vector<16x256xf32>
    %c1_15 = arith.constant 1 : index
    %c1_16 = arith.constant 1 : index
    %36 = memref.load %arg2[%c1_15, %c1_16] : memref<4x16xf32, #tpu.memory_space<smem>>
    %37 = vector.broadcast %36 : f32 to vector<16x256xf32>
    %38 = arith.mulf %4, %37 : vector<16x256xf32>
    %39 = arith.addf %35, %38 : vector<16x256xf32>
    %c2_17 = arith.constant 2 : index
    %c1_18 = arith.constant 1 : index
    %40 = memref.load %arg2[%c2_17, %c1_18] : memref<4x16xf32, #tpu.memory_space<smem>>
    %41 = vector.broadcast %40 : f32 to vector<16x256xf32>
    %42 = arith.mulf %6, %41 : vector<16x256xf32>
    %43 = arith.addf %39, %42 : vector<16x256xf32>
    %c3_19 = arith.constant 3 : index
    %c1_20 = arith.constant 1 : index
    %44 = memref.load %arg2[%c3_19, %c1_20] : memref<4x16xf32, #tpu.memory_space<smem>>
    %45 = vector.broadcast %44 : f32 to vector<16x256xf32>
    %46 = arith.mulf %8, %45 : vector<16x256xf32>
    %47 = arith.addf %43, %46 : vector<16x256xf32>
    %c0_21 = arith.constant 0 : index
    %c1_22 = arith.constant 1 : index
    %48 = memref.load %arg3[%c0_21, %c1_22] : memref<1x16xf32, #tpu.memory_space<smem>>
    %49 = vector.broadcast %48 : f32 to vector<16x256xf32>
    %50 = arith.addf %47, %49 : vector<16x256xf32>
    %cst_23 = arith.constant 0.000000e+00 : f32
    %51 = vector.broadcast %cst_23 : f32 to vector<16x256xf32>
    %52 = arith.maximumf %50, %51 : vector<16x256xf32>
    %c0_24 = arith.constant 0 : index
    %c256 = arith.constant 256 : index
    %53 = vector.load %arg8[%c0_24, %c256] : memref<16x4096xf32, #tpu.memory_space<vmem>>, vector<16x256xf32>
    tpu.vector_store %arg8[%c0_24, %c256], %52 {strides = array<i32>} : memref<16x4096xf32, #tpu.memory_space<vmem>>, vector<16x256xf32>,
    %cst_25 = arith.constant dense<0.000000e+00> : vector<16xf32>
    %54 = vector.multi_reduction <add>, %52, %cst_25 [1] : vector<16x256xf32> to vector<16xf32>
    %55 = vector.shape_cast %54 : vector<16xf32> to vector<16x1xf32>
    %c0_26 = arith.constant 0 : index
    %c1_27 = arith.constant 1 : index
    %56 = vector.load %arg10[%c0_26, %c1_27] : memref<16x16xf32, #tpu.memory_space<vmem>>, vector<16x1xf32>
    tpu.vector_store %arg10[%c0_26, %c1_27], %55 {strides = array<i32>} : memref<16x16xf32, #tpu.memory_space<vmem>>, vector<16x1xf32>,
    %c0_28 = arith.constant 0 : index
    %c2_29 = arith.constant 2 : index
    %57 = memref.load %arg2[%c0_28, %c2_29] : memref<4x16xf32, #tpu.memory_space<smem>>
    %58 = vector.broadcast %57 : f32 to vector<16x256xf32>
    %59 = arith.mulf %2, %58 : vector<16x256xf32>
    %c1_30 = arith.constant 1 : index
    %c2_31 = arith.constant 2 : index
    %60 = memref.load %arg2[%c1_30, %c2_31] : memref<4x16xf32, #tpu.memory_space<smem>>
    %61 = vector.broadcast %60 : f32 to vector<16x256xf32>
    %62 = arith.mulf %4, %61 : vector<16x256xf32>
    %63 = arith.addf %59, %62 : vector<16x256xf32>
    %c2_32 = arith.constant 2 : index
    %c2_33 = arith.constant 2 : index
    %64 = memref.load %arg2[%c2_32, %c2_33] : memref<4x16xf32, #tpu.memory_space<smem>>
    %65 = vector.broadcast %64 : f32 to vector<16x256xf32>
    %66 = arith.mulf %6, %65 : vector<16x256xf32>
    %67 = arith.addf %63, %66 : vector<16x256xf32>
    %c3_34 = arith.constant 3 : index
    %c2_35 = arith.constant 2 : index
    %68 = memref.load %arg2[%c3_34, %c2_35] : memref<4x16xf32, #tpu.memory_space<smem>>
    %69 = vector.broadcast %68 : f32 to vector<16x256xf32>
    %70 = arith.mulf %8, %69 : vector<16x256xf32>
    %71 = arith.addf %67, %70 : vector<16x256xf32>
    %c0_36 = arith.constant 0 : index
    %c2_37 = arith.constant 2 : index
    %72 = memref.load %arg3[%c0_36, %c2_37] : memref<1x16xf32, #tpu.memory_space<smem>>
    %73 = vector.broadcast %72 : f32 to vector<16x256xf32>
    %74 = arith.addf %71, %73 : vector<16x256xf32>
    %cst_38 = arith.constant 0.000000e+00 : f32
    %75 = vector.broadcast %cst_38 : f32 to vector<16x256xf32>
    %76 = arith.maximumf %74, %75 : vector<16x256xf32>
    %c0_39 = arith.constant 0 : index
    %c512 = arith.constant 512 : index
    %77 = vector.load %arg8[%c0_39, %c512] : memref<16x4096xf32, #tpu.memory_space<vmem>>, vector<16x256xf32>
    tpu.vector_store %arg8[%c0_39, %c512], %76 {strides = array<i32>} : memref<16x4096xf32, #tpu.memory_space<vmem>>, vector<16x256xf32>,
    %cst_40 = arith.constant dense<0.000000e+00> : vector<16xf32>
    %78 = vector.multi_reduction <add>, %76, %cst_40 [1] : vector<16x256xf32> to vector<16xf32>
    %79 = vector.shape_cast %78 : vector<16xf32> to vector<16x1xf32>
    %c0_41 = arith.constant 0 : index
    %c2_42 = arith.constant 2 : index
    %80 = vector.load %arg10[%c0_41, %c2_42] : memref<16x16xf32, #tpu.memory_space<vmem>>, vector<16x1xf32>
    tpu.vector_store %arg10[%c0_41, %c2_42], %79 {strides = array<i32>} : memref<16x16xf32, #tpu.memory_space<vmem>>, vector<16x1xf32>,
    %c0_43 = arith.constant 0 : index
    %c3_44 = arith.constant 3 : index
    %81 = memref.load %arg2[%c0_43, %c3_44] : memref<4x16xf32, #tpu.memory_space<smem>>
    %82 = vector.broadcast %81 : f32 to vector<16x256xf32>
    %83 = arith.mulf %2, %82 : vector<16x256xf32>
    %c1_45 = arith.constant 1 : index
    %c3_46 = arith.constant 3 : index
    %84 = memref.load %arg2[%c1_45, %c3_46] : memref<4x16xf32, #tpu.memory_space<smem>>
    %85 = vector.broadcast %84 : f32 to vector<16x256xf32>
    %86 = arith.mulf %4, %85 : vector<16x256xf32>
    %87 = arith.addf %83, %86 : vector<16x256xf32>
    %c2_47 = arith.constant 2 : index
    %c3_48 = arith.constant 3 : index
    %88 = memref.load %arg2[%c2_47, %c3_48] : memref<4x16xf32, #tpu.memory_space<smem>>
    %89 = vector.broadcast %88 : f32 to vector<16x256xf32>
    %90 = arith.mulf %6, %89 : vector<16x256xf32>
    %91 = arith.addf %87, %90 : vector<16x256xf32>
    %c3_49 = arith.constant 3 : index
    %c3_50 = arith.constant 3 : index
    %92 = memref.load %arg2[%c3_49, %c3_50] : memref<4x16xf32, #tpu.memory_space<smem>>
    %93 = vector.broadcast %92 : f32 to vector<16x256xf32>
    %94 = arith.mulf %8, %93 : vector<16x256xf32>
    %95 = arith.addf %91, %94 : vector<16x256xf32>
    %c0_51 = arith.constant 0 : index
    %c3_52 = arith.constant 3 : index
    %96 = memref.load %arg3[%c0_51, %c3_52] : memref<1x16xf32, #tpu.memory_space<smem>>
    %97 = vector.broadcast %96 : f32 to vector<16x256xf32>
    %98 = arith.addf %95, %97 : vector<16x256xf32>
    %cst_53 = arith.constant 0.000000e+00 : f32
    %99 = vector.broadcast %cst_53 : f32 to vector<16x256xf32>
    %100 = arith.maximumf %98, %99 : vector<16x256xf32>
    %c0_54 = arith.constant 0 : index
    %c768 = arith.constant 768 : index
    %101 = vector.load %arg8[%c0_54, %c768] : memref<16x4096xf32, #tpu.memory_space<vmem>>, vector<16x256xf32>
    tpu.vector_store %arg8[%c0_54, %c768], %100 {strides = array<i32>} : memref<16x4096xf32, #tpu.memory_space<vmem>>, vector<16x256xf32>,
    %cst_55 = arith.constant dense<0.000000e+00> : vector<16xf32>
    %102 = vector.multi_reduction <add>, %100, %cst_55 [1] : vector<16x256xf32> to vector<16xf32>
    %103 = vector.shape_cast %102 : vector<16xf32> to vector<16x1xf32>
    %c0_56 = arith.constant 0 : index
    %c3_57 = arith.constant 3 : index
    %104 = vector.load %arg10[%c0_56, %c3_57] : memref<16x16xf32, #tpu.memory_space<vmem>>, vector<16x1xf32>
    tpu.vector_store %arg10[%c0_56, %c3_57], %103 {strides = array<i32>} : memref<16x16xf32, #tpu.memory_space<vmem>>, vector<16x1xf32>,
    %c0_58 = arith.constant 0 : index
    %c4 = arith.constant 4 : index
    %105 = memref.load %arg2[%c0_58, %c4] : memref<4x16xf32, #tpu.memory_space<smem>>
    %106 = vector.broadcast %105 : f32 to vector<16x256xf32>
    %107 = arith.mulf %2, %106 : vector<16x256xf32>
    %c1_59 = arith.constant 1 : index
    %c4_60 = arith.constant 4 : index
    %108 = memref.load %arg2[%c1_59, %c4_60] : memref<4x16xf32, #tpu.memory_space<smem>>
    %109 = vector.broadcast %108 : f32 to vector<16x256xf32>
    %110 = arith.mulf %4, %109 : vector<16x256xf32>
    %111 = arith.addf %107, %110 : vector<16x256xf32>
    %c2_61 = arith.constant 2 : index
    %c4_62 = arith.constant 4 : index
    %112 = memref.load %arg2[%c2_61, %c4_62] : memref<4x16xf32, #tpu.memory_space<smem>>
    %113 = vector.broadcast %112 : f32 to vector<16x256xf32>
    %114 = arith.mulf %6, %113 : vector<16x256xf32>
    %115 = arith.addf %111, %114 : vector<16x256xf32>
    %c3_63 = arith.constant 3 : index
    %c4_64 = arith.constant 4 : index
    %116 = memref.load %arg2[%c3_63, %c4_64] : memref<4x16xf32, #tpu.memory_space<smem>>
    %117 = vector.broadcast %116 : f32 to vector<16x256xf32>
    %118 = arith.mulf %8, %117 : vector<16x256xf32>
    %119 = arith.addf %115, %118 : vector<16x256xf32>
    %c0_65 = arith.constant 0 : index
    %c4_66 = arith.constant 4 : index
    %120 = memref.load %arg3[%c0_65, %c4_66] : memref<1x16xf32, #tpu.memory_space<smem>>
    %121 = vector.broadcast %120 : f32 to vector<16x256xf32>
    %122 = arith.addf %119, %121 : vector<16x256xf32>
    %cst_67 = arith.constant 0.000000e+00 : f32
    %123 = vector.broadcast %cst_67 : f32 to vector<16x256xf32>
    %124 = arith.maximumf %122, %123 : vector<16x256xf32>
    %c0_68 = arith.constant 0 : index
    %c1024 = arith.constant 1024 : index
    %125 = vector.load %arg8[%c0_68, %c1024] : memref<16x4096xf32, #tpu.memory_space<vmem>>, vector<16x256xf32>
    tpu.vector_store %arg8[%c0_68, %c1024], %124 {strides = array<i32>} : memref<16x4096xf32, #tpu.memory_space<vmem>>, vector<16x256xf32>,
    %cst_69 = arith.constant dense<0.000000e+00> : vector<16xf32>
    %126 = vector.multi_reduction <add>, %124, %cst_69 [1] : vector<16x256xf32> to vector<16xf32>
    %127 = vector.shape_cast %126 : vector<16xf32> to vector<16x1xf32>
    %c0_70 = arith.constant 0 : index
    %c4_71 = arith.constant 4 : index
    %128 = vector.load %arg10[%c0_70, %c4_71] : memref<16x16xf32, #tpu.memory_space<vmem>>, vector<16x1xf32>
    tpu.vector_store %arg10[%c0_70, %c4_71], %127 {strides = array<i32>} : memref<16x16xf32, #tpu.memory_space<vmem>>, vector<16x1xf32>,
    %c0_72 = arith.constant 0 : index
    %c5 = arith.constant 5 : index
    %129 = memref.load %arg2[%c0_72, %c5] : memref<4x16xf32, #tpu.memory_space<smem>>
    %130 = vector.broadcast %129 : f32 to vector<16x256xf32>
    %131 = arith.mulf %2, %130 : vector<16x256xf32>
    %c1_73 = arith.constant 1 : index
    %c5_74 = arith.constant 5 : index
    %132 = memref.load %arg2[%c1_73, %c5_74] : memref<4x16xf32, #tpu.memory_space<smem>>
    %133 = vector.broadcast %132 : f32 to vector<16x256xf32>
    %134 = arith.mulf %4, %133 : vector<16x256xf32>
    %135 = arith.addf %131, %134 : vector<16x256xf32>
    %c2_75 = arith.constant 2 : index
    %c5_76 = arith.constant 5 : index
    %136 = memref.load %arg2[%c2_75, %c5_76] : memref<4x16xf32, #tpu.memory_space<smem>>
    %137 = vector.broadcast %136 : f32 to vector<16x256xf32>
    %138 = arith.mulf %6, %137 : vector<16x256xf32>
    %139 = arith.addf %135, %138 : vector<16x256xf32>
    %c3_77 = arith.constant 3 : index
    %c5_78 = arith.constant 5 : index
    %140 = memref.load %arg2[%c3_77, %c5_78] : memref<4x16xf32, #tpu.memory_space<smem>>
    %141 = vector.broadcast %140 : f32 to vector<16x256xf32>
    %142 = arith.mulf %8, %141 : vector<16x256xf32>
    %143 = arith.addf %139, %142 : vector<16x256xf32>
    %c0_79 = arith.constant 0 : index
    %c5_80 = arith.constant 5 : index
    %144 = memref.load %arg3[%c0_79, %c5_80] : memref<1x16xf32, #tpu.memory_space<smem>>
    %145 = vector.broadcast %144 : f32 to vector<16x256xf32>
    %146 = arith.addf %143, %145 : vector<16x256xf32>
    %cst_81 = arith.constant 0.000000e+00 : f32
    %147 = vector.broadcast %cst_81 : f32 to vector<16x256xf32>
    %148 = arith.maximumf %146, %147 : vector<16x256xf32>
    %c0_82 = arith.constant 0 : index
    %c1280 = arith.constant 1280 : index
    %149 = vector.load %arg8[%c0_82, %c1280] : memref<16x4096xf32, #tpu.memory_space<vmem>>, vector<16x256xf32>
    tpu.vector_store %arg8[%c0_82, %c1280], %148 {strides = array<i32>} : memref<16x4096xf32, #tpu.memory_space<vmem>>, vector<16x256xf32>,
    %cst_83 = arith.constant dense<0.000000e+00> : vector<16xf32>
    %150 = vector.multi_reduction <add>, %148, %cst_83 [1] : vector<16x256xf32> to vector<16xf32>
    %151 = vector.shape_cast %150 : vector<16xf32> to vector<16x1xf32>
    %c0_84 = arith.constant 0 : index
    %c5_85 = arith.constant 5 : index
    %152 = vector.load %arg10[%c0_84, %c5_85] : memref<16x16xf32, #tpu.memory_space<vmem>>, vector<16x1xf32>
    tpu.vector_store %arg10[%c0_84, %c5_85], %151 {strides = array<i32>} : memref<16x16xf32, #tpu.memory_space<vmem>>, vector<16x1xf32>,
    %c0_86 = arith.constant 0 : index
    %c6 = arith.constant 6 : index
    %153 = memref.load %arg2[%c0_86, %c6] : memref<4x16xf32, #tpu.memory_space<smem>>
    %154 = vector.broadcast %153 : f32 to vector<16x256xf32>
    %155 = arith.mulf %2, %154 : vector<16x256xf32>
    %c1_87 = arith.constant 1 : index
    %c6_88 = arith.constant 6 : index
    %156 = memref.load %arg2[%c1_87, %c6_88] : memref<4x16xf32, #tpu.memory_space<smem>>
    %157 = vector.broadcast %156 : f32 to vector<16x256xf32>
    %158 = arith.mulf %4, %157 : vector<16x256xf32>
    %159 = arith.addf %155, %158 : vector<16x256xf32>
    %c2_89 = arith.constant 2 : index
    %c6_90 = arith.constant 6 : index
    %160 = memref.load %arg2[%c2_89, %c6_90] : memref<4x16xf32, #tpu.memory_space<smem>>
    %161 = vector.broadcast %160 : f32 to vector<16x256xf32>
    %162 = arith.mulf %6, %161 : vector<16x256xf32>
    %163 = arith.addf %159, %162 : vector<16x256xf32>
    %c3_91 = arith.constant 3 : index
    %c6_92 = arith.constant 6 : index
    %164 = memref.load %arg2[%c3_91, %c6_92] : memref<4x16xf32, #tpu.memory_space<smem>>
    %165 = vector.broadcast %164 : f32 to vector<16x256xf32>
    %166 = arith.mulf %8, %165 : vector<16x256xf32>
    %167 = arith.addf %163, %166 : vector<16x256xf32>
    %c0_93 = arith.constant 0 : index
    %c6_94 = arith.constant 6 : index
    %168 = memref.load %arg3[%c0_93, %c6_94] : memref<1x16xf32, #tpu.memory_space<smem>>
    %169 = vector.broadcast %168 : f32 to vector<16x256xf32>
    %170 = arith.addf %167, %169 : vector<16x256xf32>
    %cst_95 = arith.constant 0.000000e+00 : f32
    %171 = vector.broadcast %cst_95 : f32 to vector<16x256xf32>
    %172 = arith.maximumf %170, %171 : vector<16x256xf32>
    %c0_96 = arith.constant 0 : index
    %c1536 = arith.constant 1536 : index
    %173 = vector.load %arg8[%c0_96, %c1536] : memref<16x4096xf32, #tpu.memory_space<vmem>>, vector<16x256xf32>
    tpu.vector_store %arg8[%c0_96, %c1536], %172 {strides = array<i32>} : memref<16x4096xf32, #tpu.memory_space<vmem>>, vector<16x256xf32>,
    %cst_97 = arith.constant dense<0.000000e+00> : vector<16xf32>
    %174 = vector.multi_reduction <add>, %172, %cst_97 [1] : vector<16x256xf32> to vector<16xf32>
    %175 = vector.shape_cast %174 : vector<16xf32> to vector<16x1xf32>
    %c0_98 = arith.constant 0 : index
    %c6_99 = arith.constant 6 : index
    %176 = vector.load %arg10[%c0_98, %c6_99] : memref<16x16xf32, #tpu.memory_space<vmem>>, vector<16x1xf32>
    tpu.vector_store %arg10[%c0_98, %c6_99], %175 {strides = array<i32>} : memref<16x16xf32, #tpu.memory_space<vmem>>, vector<16x1xf32>,
    %c0_100 = arith.constant 0 : index
    %c7 = arith.constant 7 : index
    %177 = memref.load %arg2[%c0_100, %c7] : memref<4x16xf32, #tpu.memory_space<smem>>
    %178 = vector.broadcast %177 : f32 to vector<16x256xf32>
    %179 = arith.mulf %2, %178 : vector<16x256xf32>
    %c1_101 = arith.constant 1 : index
    %c7_102 = arith.constant 7 : index
    %180 = memref.load %arg2[%c1_101, %c7_102] : memref<4x16xf32, #tpu.memory_space<smem>>
    %181 = vector.broadcast %180 : f32 to vector<16x256xf32>
    %182 = arith.mulf %4, %181 : vector<16x256xf32>
    %183 = arith.addf %179, %182 : vector<16x256xf32>
    %c2_103 = arith.constant 2 : index
    %c7_104 = arith.constant 7 : index
    %184 = memref.load %arg2[%c2_103, %c7_104] : memref<4x16xf32, #tpu.memory_space<smem>>
    %185 = vector.broadcast %184 : f32 to vector<16x256xf32>
    %186 = arith.mulf %6, %185 : vector<16x256xf32>
    %187 = arith.addf %183, %186 : vector<16x256xf32>
    %c3_105 = arith.constant 3 : index
    %c7_106 = arith.constant 7 : index
    %188 = memref.load %arg2[%c3_105, %c7_106] : memref<4x16xf32, #tpu.memory_space<smem>>
    %189 = vector.broadcast %188 : f32 to vector<16x256xf32>
    %190 = arith.mulf %8, %189 : vector<16x256xf32>
    %191 = arith.addf %187, %190 : vector<16x256xf32>
    %c0_107 = arith.constant 0 : index
    %c7_108 = arith.constant 7 : index
    %192 = memref.load %arg3[%c0_107, %c7_108] : memref<1x16xf32, #tpu.memory_space<smem>>
    %193 = vector.broadcast %192 : f32 to vector<16x256xf32>
    %194 = arith.addf %191, %193 : vector<16x256xf32>
    %cst_109 = arith.constant 0.000000e+00 : f32
    %195 = vector.broadcast %cst_109 : f32 to vector<16x256xf32>
    %196 = arith.maximumf %194, %195 : vector<16x256xf32>
    %c0_110 = arith.constant 0 : index
    %c1792 = arith.constant 1792 : index
    %197 = vector.load %arg8[%c0_110, %c1792] : memref<16x4096xf32, #tpu.memory_space<vmem>>, vector<16x256xf32>
    tpu.vector_store %arg8[%c0_110, %c1792], %196 {strides = array<i32>} : memref<16x4096xf32, #tpu.memory_space<vmem>>, vector<16x256xf32>,
    %cst_111 = arith.constant dense<0.000000e+00> : vector<16xf32>
    %198 = vector.multi_reduction <add>, %196, %cst_111 [1] : vector<16x256xf32> to vector<16xf32>
    %199 = vector.shape_cast %198 : vector<16xf32> to vector<16x1xf32>
    %c0_112 = arith.constant 0 : index
    %c7_113 = arith.constant 7 : index
    %200 = vector.load %arg10[%c0_112, %c7_113] : memref<16x16xf32, #tpu.memory_space<vmem>>, vector<16x1xf32>
    tpu.vector_store %arg10[%c0_112, %c7_113], %199 {strides = array<i32>} : memref<16x16xf32, #tpu.memory_space<vmem>>, vector<16x1xf32>,
    %c0_114 = arith.constant 0 : index
    %c8 = arith.constant 8 : index
    %201 = memref.load %arg2[%c0_114, %c8] : memref<4x16xf32, #tpu.memory_space<smem>>
    %202 = vector.broadcast %201 : f32 to vector<16x256xf32>
    %203 = arith.mulf %2, %202 : vector<16x256xf32>
    %c1_115 = arith.constant 1 : index
    %c8_116 = arith.constant 8 : index
    %204 = memref.load %arg2[%c1_115, %c8_116] : memref<4x16xf32, #tpu.memory_space<smem>>
    %205 = vector.broadcast %204 : f32 to vector<16x256xf32>
    %206 = arith.mulf %4, %205 : vector<16x256xf32>
    %207 = arith.addf %203, %206 : vector<16x256xf32>
    %c2_117 = arith.constant 2 : index
    %c8_118 = arith.constant 8 : index
    %208 = memref.load %arg2[%c2_117, %c8_118] : memref<4x16xf32, #tpu.memory_space<smem>>
    %209 = vector.broadcast %208 : f32 to vector<16x256xf32>
    %210 = arith.mulf %6, %209 : vector<16x256xf32>
    %211 = arith.addf %207, %210 : vector<16x256xf32>
    %c3_119 = arith.constant 3 : index
    %c8_120 = arith.constant 8 : index
    %212 = memref.load %arg2[%c3_119, %c8_120] : memref<4x16xf32, #tpu.memory_space<smem>>
    %213 = vector.broadcast %212 : f32 to vector<16x256xf32>
    %214 = arith.mulf %8, %213 : vector<16x256xf32>
    %215 = arith.addf %211, %214 : vector<16x256xf32>
    %c0_121 = arith.constant 0 : index
    %c8_122 = arith.constant 8 : index
    %216 = memref.load %arg3[%c0_121, %c8_122] : memref<1x16xf32, #tpu.memory_space<smem>>
    %217 = vector.broadcast %216 : f32 to vector<16x256xf32>
    %218 = arith.addf %215, %217 : vector<16x256xf32>
    %cst_123 = arith.constant 0.000000e+00 : f32
    %219 = vector.broadcast %cst_123 : f32 to vector<16x256xf32>
    %220 = arith.maximumf %218, %219 : vector<16x256xf32>
    %c0_124 = arith.constant 0 : index
    %c2048 = arith.constant 2048 : index
    %221 = vector.load %arg8[%c0_124, %c2048] : memref<16x4096xf32, #tpu.memory_space<vmem>>, vector<16x256xf32>
    tpu.vector_store %arg8[%c0_124, %c2048], %220 {strides = array<i32>} : memref<16x4096xf32, #tpu.memory_space<vmem>>, vector<16x256xf32>,
    %cst_125 = arith.constant dense<0.000000e+00> : vector<16xf32>
    %222 = vector.multi_reduction <add>, %220, %cst_125 [1] : vector<16x256xf32> to vector<16xf32>
    %223 = vector.shape_cast %222 : vector<16xf32> to vector<16x1xf32>
    %c0_126 = arith.constant 0 : index
    %c8_127 = arith.constant 8 : index
    %224 = vector.load %arg10[%c0_126, %c8_127] : memref<16x16xf32, #tpu.memory_space<vmem>>, vector<16x1xf32>
    tpu.vector_store %arg10[%c0_126, %c8_127], %223 {strides = array<i32>} : memref<16x16xf32, #tpu.memory_space<vmem>>, vector<16x1xf32>,
    %c0_128 = arith.constant 0 : index
    %c9 = arith.constant 9 : index
    %225 = memref.load %arg2[%c0_128, %c9] : memref<4x16xf32, #tpu.memory_space<smem>>
    %226 = vector.broadcast %225 : f32 to vector<16x256xf32>
    %227 = arith.mulf %2, %226 : vector<16x256xf32>
    %c1_129 = arith.constant 1 : index
    %c9_130 = arith.constant 9 : index
    %228 = memref.load %arg2[%c1_129, %c9_130] : memref<4x16xf32, #tpu.memory_space<smem>>
    %229 = vector.broadcast %228 : f32 to vector<16x256xf32>
    %230 = arith.mulf %4, %229 : vector<16x256xf32>
    %231 = arith.addf %227, %230 : vector<16x256xf32>
    %c2_131 = arith.constant 2 : index
    %c9_132 = arith.constant 9 : index
    %232 = memref.load %arg2[%c2_131, %c9_132] : memref<4x16xf32, #tpu.memory_space<smem>>
    %233 = vector.broadcast %232 : f32 to vector<16x256xf32>
    %234 = arith.mulf %6, %233 : vector<16x256xf32>
    %235 = arith.addf %231, %234 : vector<16x256xf32>
    %c3_133 = arith.constant 3 : index
    %c9_134 = arith.constant 9 : index
    %236 = memref.load %arg2[%c3_133, %c9_134] : memref<4x16xf32, #tpu.memory_space<smem>>
    %237 = vector.broadcast %236 : f32 to vector<16x256xf32>
    %238 = arith.mulf %8, %237 : vector<16x256xf32>
    %239 = arith.addf %235, %238 : vector<16x256xf32>
    %c0_135 = arith.constant 0 : index
    %c9_136 = arith.constant 9 : index
    %240 = memref.load %arg3[%c0_135, %c9_136] : memref<1x16xf32, #tpu.memory_space<smem>>
    %241 = vector.broadcast %240 : f32 to vector<16x256xf32>
    %242 = arith.addf %239, %241 : vector<16x256xf32>
    %cst_137 = arith.constant 0.000000e+00 : f32
    %243 = vector.broadcast %cst_137 : f32 to vector<16x256xf32>
    %244 = arith.maximumf %242, %243 : vector<16x256xf32>
    %c0_138 = arith.constant 0 : index
    %c2304 = arith.constant 2304 : index
    %245 = vector.load %arg8[%c0_138, %c2304] : memref<16x4096xf32, #tpu.memory_space<vmem>>, vector<16x256xf32>
    tpu.vector_store %arg8[%c0_138, %c2304], %244 {strides = array<i32>} : memref<16x4096xf32, #tpu.memory_space<vmem>>, vector<16x256xf32>,
    %cst_139 = arith.constant dense<0.000000e+00> : vector<16xf32>
    %246 = vector.multi_reduction <add>, %244, %cst_139 [1] : vector<16x256xf32> to vector<16xf32>
    %247 = vector.shape_cast %246 : vector<16xf32> to vector<16x1xf32>
    %c0_140 = arith.constant 0 : index
    %c9_141 = arith.constant 9 : index
    %248 = vector.load %arg10[%c0_140, %c9_141] : memref<16x16xf32, #tpu.memory_space<vmem>>, vector<16x1xf32>
    tpu.vector_store %arg10[%c0_140, %c9_141], %247 {strides = array<i32>} : memref<16x16xf32, #tpu.memory_space<vmem>>, vector<16x1xf32>,
    %c0_142 = arith.constant 0 : index
    %c10 = arith.constant 10 : index
    %249 = memref.load %arg2[%c0_142, %c10] : memref<4x16xf32, #tpu.memory_space<smem>>
    %250 = vector.broadcast %249 : f32 to vector<16x256xf32>
    %251 = arith.mulf %2, %250 : vector<16x256xf32>
    %c1_143 = arith.constant 1 : index
    %c10_144 = arith.constant 10 : index
    %252 = memref.load %arg2[%c1_143, %c10_144] : memref<4x16xf32, #tpu.memory_space<smem>>
    %253 = vector.broadcast %252 : f32 to vector<16x256xf32>
    %254 = arith.mulf %4, %253 : vector<16x256xf32>
    %255 = arith.addf %251, %254 : vector<16x256xf32>
    %c2_145 = arith.constant 2 : index
    %c10_146 = arith.constant 10 : index
    %256 = memref.load %arg2[%c2_145, %c10_146] : memref<4x16xf32, #tpu.memory_space<smem>>
    %257 = vector.broadcast %256 : f32 to vector<16x256xf32>
    %258 = arith.mulf %6, %257 : vector<16x256xf32>
    %259 = arith.addf %255, %258 : vector<16x256xf32>
    %c3_147 = arith.constant 3 : index
    %c10_148 = arith.constant 10 : index
    %260 = memref.load %arg2[%c3_147, %c10_148] : memref<4x16xf32, #tpu.memory_space<smem>>
    %261 = vector.broadcast %260 : f32 to vector<16x256xf32>
    %262 = arith.mulf %8, %261 : vector<16x256xf32>
    %263 = arith.addf %259, %262 : vector<16x256xf32>
    %c0_149 = arith.constant 0 : index
    %c10_150 = arith.constant 10 : index
    %264 = memref.load %arg3[%c0_149, %c10_150] : memref<1x16xf32, #tpu.memory_space<smem>>
    %265 = vector.broadcast %264 : f32 to vector<16x256xf32>
    %266 = arith.addf %263, %265 : vector<16x256xf32>
    %cst_151 = arith.constant 0.000000e+00 : f32
    %267 = vector.broadcast %cst_151 : f32 to vector<16x256xf32>
    %268 = arith.maximumf %266, %267 : vector<16x256xf32>
    %c0_152 = arith.constant 0 : index
    %c2560 = arith.constant 2560 : index
    %269 = vector.load %arg8[%c0_152, %c2560] : memref<16x4096xf32, #tpu.memory_space<vmem>>, vector<16x256xf32>
    tpu.vector_store %arg8[%c0_152, %c2560], %268 {strides = array<i32>} : memref<16x4096xf32, #tpu.memory_space<vmem>>, vector<16x256xf32>,
    %cst_153 = arith.constant dense<0.000000e+00> : vector<16xf32>
    %270 = vector.multi_reduction <add>, %268, %cst_153 [1] : vector<16x256xf32> to vector<16xf32>
    %271 = vector.shape_cast %270 : vector<16xf32> to vector<16x1xf32>
    %c0_154 = arith.constant 0 : index
    %c10_155 = arith.constant 10 : index
    %272 = vector.load %arg10[%c0_154, %c10_155] : memref<16x16xf32, #tpu.memory_space<vmem>>, vector<16x1xf32>
    tpu.vector_store %arg10[%c0_154, %c10_155], %271 {strides = array<i32>} : memref<16x16xf32, #tpu.memory_space<vmem>>, vector<16x1xf32>,
    %c0_156 = arith.constant 0 : index
    %c11 = arith.constant 11 : index
    %273 = memref.load %arg2[%c0_156, %c11] : memref<4x16xf32, #tpu.memory_space<smem>>
    %274 = vector.broadcast %273 : f32 to vector<16x256xf32>
    %275 = arith.mulf %2, %274 : vector<16x256xf32>
    %c1_157 = arith.constant 1 : index
    %c11_158 = arith.constant 11 : index
    %276 = memref.load %arg2[%c1_157, %c11_158] : memref<4x16xf32, #tpu.memory_space<smem>>
    %277 = vector.broadcast %276 : f32 to vector<16x256xf32>
    %278 = arith.mulf %4, %277 : vector<16x256xf32>
    %279 = arith.addf %275, %278 : vector<16x256xf32>
    %c2_159 = arith.constant 2 : index
    %c11_160 = arith.constant 11 : index
    %280 = memref.load %arg2[%c2_159, %c11_160] : memref<4x16xf32, #tpu.memory_space<smem>>
    %281 = vector.broadcast %280 : f32 to vector<16x256xf32>
    %282 = arith.mulf %6, %281 : vector<16x256xf32>
    %283 = arith.addf %279, %282 : vector<16x256xf32>
    %c3_161 = arith.constant 3 : index
    %c11_162 = arith.constant 11 : index
    %284 = memref.load %arg2[%c3_161, %c11_162] : memref<4x16xf32, #tpu.memory_space<smem>>
    %285 = vector.broadcast %284 : f32 to vector<16x256xf32>
    %286 = arith.mulf %8, %285 : vector<16x256xf32>
    %287 = arith.addf %283, %286 : vector<16x256xf32>
    %c0_163 = arith.constant 0 : index
    %c11_164 = arith.constant 11 : index
    %288 = memref.load %arg3[%c0_163, %c11_164] : memref<1x16xf32, #tpu.memory_space<smem>>
    %289 = vector.broadcast %288 : f32 to vector<16x256xf32>
    %290 = arith.addf %287, %289 : vector<16x256xf32>
    %cst_165 = arith.constant 0.000000e+00 : f32
    %291 = vector.broadcast %cst_165 : f32 to vector<16x256xf32>
    %292 = arith.maximumf %290, %291 : vector<16x256xf32>
    %c0_166 = arith.constant 0 : index
    %c2816 = arith.constant 2816 : index
    %293 = vector.load %arg8[%c0_166, %c2816] : memref<16x4096xf32, #tpu.memory_space<vmem>>, vector<16x256xf32>
    tpu.vector_store %arg8[%c0_166, %c2816], %292 {strides = array<i32>} : memref<16x4096xf32, #tpu.memory_space<vmem>>, vector<16x256xf32>,
    %cst_167 = arith.constant dense<0.000000e+00> : vector<16xf32>
    %294 = vector.multi_reduction <add>, %292, %cst_167 [1] : vector<16x256xf32> to vector<16xf32>
    %295 = vector.shape_cast %294 : vector<16xf32> to vector<16x1xf32>
    %c0_168 = arith.constant 0 : index
    %c11_169 = arith.constant 11 : index
    %296 = vector.load %arg10[%c0_168, %c11_169] : memref<16x16xf32, #tpu.memory_space<vmem>>, vector<16x1xf32>
    tpu.vector_store %arg10[%c0_168, %c11_169], %295 {strides = array<i32>} : memref<16x16xf32, #tpu.memory_space<vmem>>, vector<16x1xf32>,
    %c0_170 = arith.constant 0 : index
    %c12 = arith.constant 12 : index
    %297 = memref.load %arg2[%c0_170, %c12] : memref<4x16xf32, #tpu.memory_space<smem>>
    %298 = vector.broadcast %297 : f32 to vector<16x256xf32>
    %299 = arith.mulf %2, %298 : vector<16x256xf32>
    %c1_171 = arith.constant 1 : index
    %c12_172 = arith.constant 12 : index
    %300 = memref.load %arg2[%c1_171, %c12_172] : memref<4x16xf32, #tpu.memory_space<smem>>
    %301 = vector.broadcast %300 : f32 to vector<16x256xf32>
    %302 = arith.mulf %4, %301 : vector<16x256xf32>
    %303 = arith.addf %299, %302 : vector<16x256xf32>
    %c2_173 = arith.constant 2 : index
    %c12_174 = arith.constant 12 : index
    %304 = memref.load %arg2[%c2_173, %c12_174] : memref<4x16xf32, #tpu.memory_space<smem>>
    %305 = vector.broadcast %304 : f32 to vector<16x256xf32>
    %306 = arith.mulf %6, %305 : vector<16x256xf32>
    %307 = arith.addf %303, %306 : vector<16x256xf32>
    %c3_175 = arith.constant 3 : index
    %c12_176 = arith.constant 12 : index
    %308 = memref.load %arg2[%c3_175, %c12_176] : memref<4x16xf32, #tpu.memory_space<smem>>
    %309 = vector.broadcast %308 : f32 to vector<16x256xf32>
    %310 = arith.mulf %8, %309 : vector<16x256xf32>
    %311 = arith.addf %307, %310 : vector<16x256xf32>
    %c0_177 = arith.constant 0 : index
    %c12_178 = arith.constant 12 : index
    %312 = memref.load %arg3[%c0_177, %c12_178] : memref<1x16xf32, #tpu.memory_space<smem>>
    %313 = vector.broadcast %312 : f32 to vector<16x256xf32>
    %314 = arith.addf %311, %313 : vector<16x256xf32>
    %cst_179 = arith.constant 0.000000e+00 : f32
    %315 = vector.broadcast %cst_179 : f32 to vector<16x256xf32>
    %316 = arith.maximumf %314, %315 : vector<16x256xf32>
    %c0_180 = arith.constant 0 : index
    %c3072 = arith.constant 3072 : index
    %317 = vector.load %arg8[%c0_180, %c3072] : memref<16x4096xf32, #tpu.memory_space<vmem>>, vector<16x256xf32>
    tpu.vector_store %arg8[%c0_180, %c3072], %316 {strides = array<i32>} : memref<16x4096xf32, #tpu.memory_space<vmem>>, vector<16x256xf32>,
    %cst_181 = arith.constant dense<0.000000e+00> : vector<16xf32>
    %318 = vector.multi_reduction <add>, %316, %cst_181 [1] : vector<16x256xf32> to vector<16xf32>
    %319 = vector.shape_cast %318 : vector<16xf32> to vector<16x1xf32>
    %c0_182 = arith.constant 0 : index
    %c12_183 = arith.constant 12 : index
    %320 = vector.load %arg10[%c0_182, %c12_183] : memref<16x16xf32, #tpu.memory_space<vmem>>, vector<16x1xf32>
    tpu.vector_store %arg10[%c0_182, %c12_183], %319 {strides = array<i32>} : memref<16x16xf32, #tpu.memory_space<vmem>>, vector<16x1xf32>,
    %c0_184 = arith.constant 0 : index
    %c13 = arith.constant 13 : index
    %321 = memref.load %arg2[%c0_184, %c13] : memref<4x16xf32, #tpu.memory_space<smem>>
    %322 = vector.broadcast %321 : f32 to vector<16x256xf32>
    %323 = arith.mulf %2, %322 : vector<16x256xf32>
    %c1_185 = arith.constant 1 : index
    %c13_186 = arith.constant 13 : index
    %324 = memref.load %arg2[%c1_185, %c13_186] : memref<4x16xf32, #tpu.memory_space<smem>>
    %325 = vector.broadcast %324 : f32 to vector<16x256xf32>
    %326 = arith.mulf %4, %325 : vector<16x256xf32>
    %327 = arith.addf %323, %326 : vector<16x256xf32>
    %c2_187 = arith.constant 2 : index
    %c13_188 = arith.constant 13 : index
    %328 = memref.load %arg2[%c2_187, %c13_188] : memref<4x16xf32, #tpu.memory_space<smem>>
    %329 = vector.broadcast %328 : f32 to vector<16x256xf32>
    %330 = arith.mulf %6, %329 : vector<16x256xf32>
    %331 = arith.addf %327, %330 : vector<16x256xf32>
    %c3_189 = arith.constant 3 : index
    %c13_190 = arith.constant 13 : index
    %332 = memref.load %arg2[%c3_189, %c13_190] : memref<4x16xf32, #tpu.memory_space<smem>>
    %333 = vector.broadcast %332 : f32 to vector<16x256xf32>
    %334 = arith.mulf %8, %333 : vector<16x256xf32>
    %335 = arith.addf %331, %334 : vector<16x256xf32>
    %c0_191 = arith.constant 0 : index
    %c13_192 = arith.constant 13 : index
    %336 = memref.load %arg3[%c0_191, %c13_192] : memref<1x16xf32, #tpu.memory_space<smem>>
    %337 = vector.broadcast %336 : f32 to vector<16x256xf32>
    %338 = arith.addf %335, %337 : vector<16x256xf32>
    %cst_193 = arith.constant 0.000000e+00 : f32
    %339 = vector.broadcast %cst_193 : f32 to vector<16x256xf32>
    %340 = arith.maximumf %338, %339 : vector<16x256xf32>
    %c0_194 = arith.constant 0 : index
    %c3328 = arith.constant 3328 : index
    %341 = vector.load %arg8[%c0_194, %c3328] : memref<16x4096xf32, #tpu.memory_space<vmem>>, vector<16x256xf32>
    tpu.vector_store %arg8[%c0_194, %c3328], %340 {strides = array<i32>} : memref<16x4096xf32, #tpu.memory_space<vmem>>, vector<16x256xf32>,
    %cst_195 = arith.constant dense<0.000000e+00> : vector<16xf32>
    %342 = vector.multi_reduction <add>, %340, %cst_195 [1] : vector<16x256xf32> to vector<16xf32>
    %343 = vector.shape_cast %342 : vector<16xf32> to vector<16x1xf32>
    %c0_196 = arith.constant 0 : index
    %c13_197 = arith.constant 13 : index
    %344 = vector.load %arg10[%c0_196, %c13_197] : memref<16x16xf32, #tpu.memory_space<vmem>>, vector<16x1xf32>
    tpu.vector_store %arg10[%c0_196, %c13_197], %343 {strides = array<i32>} : memref<16x16xf32, #tpu.memory_space<vmem>>, vector<16x1xf32>,
    %c0_198 = arith.constant 0 : index
    %c14 = arith.constant 14 : index
    %345 = memref.load %arg2[%c0_198, %c14] : memref<4x16xf32, #tpu.memory_space<smem>>
    %346 = vector.broadcast %345 : f32 to vector<16x256xf32>
    %347 = arith.mulf %2, %346 : vector<16x256xf32>
    %c1_199 = arith.constant 1 : index
    %c14_200 = arith.constant 14 : index
    %348 = memref.load %arg2[%c1_199, %c14_200] : memref<4x16xf32, #tpu.memory_space<smem>>
    %349 = vector.broadcast %348 : f32 to vector<16x256xf32>
    %350 = arith.mulf %4, %349 : vector<16x256xf32>
    %351 = arith.addf %347, %350 : vector<16x256xf32>
    %c2_201 = arith.constant 2 : index
    %c14_202 = arith.constant 14 : index
    %352 = memref.load %arg2[%c2_201, %c14_202] : memref<4x16xf32, #tpu.memory_space<smem>>
    %353 = vector.broadcast %352 : f32 to vector<16x256xf32>
    %354 = arith.mulf %6, %353 : vector<16x256xf32>
    %355 = arith.addf %351, %354 : vector<16x256xf32>
    %c3_203 = arith.constant 3 : index
    %c14_204 = arith.constant 14 : index
    %356 = memref.load %arg2[%c3_203, %c14_204] : memref<4x16xf32, #tpu.memory_space<smem>>
    %357 = vector.broadcast %356 : f32 to vector<16x256xf32>
    %358 = arith.mulf %8, %357 : vector<16x256xf32>
    %359 = arith.addf %355, %358 : vector<16x256xf32>
    %c0_205 = arith.constant 0 : index
    %c14_206 = arith.constant 14 : index
    %360 = memref.load %arg3[%c0_205, %c14_206] : memref<1x16xf32, #tpu.memory_space<smem>>
    %361 = vector.broadcast %360 : f32 to vector<16x256xf32>
    %362 = arith.addf %359, %361 : vector<16x256xf32>
    %cst_207 = arith.constant 0.000000e+00 : f32
    %363 = vector.broadcast %cst_207 : f32 to vector<16x256xf32>
    %364 = arith.maximumf %362, %363 : vector<16x256xf32>
    %c0_208 = arith.constant 0 : index
    %c3584 = arith.constant 3584 : index
    %365 = vector.load %arg8[%c0_208, %c3584] : memref<16x4096xf32, #tpu.memory_space<vmem>>, vector<16x256xf32>
    tpu.vector_store %arg8[%c0_208, %c3584], %364 {strides = array<i32>} : memref<16x4096xf32, #tpu.memory_space<vmem>>, vector<16x256xf32>,
    %cst_209 = arith.constant dense<0.000000e+00> : vector<16xf32>
    %366 = vector.multi_reduction <add>, %364, %cst_209 [1] : vector<16x256xf32> to vector<16xf32>
    %367 = vector.shape_cast %366 : vector<16xf32> to vector<16x1xf32>
    %c0_210 = arith.constant 0 : index
    %c14_211 = arith.constant 14 : index
    %368 = vector.load %arg10[%c0_210, %c14_211] : memref<16x16xf32, #tpu.memory_space<vmem>>, vector<16x1xf32>
    tpu.vector_store %arg10[%c0_210, %c14_211], %367 {strides = array<i32>} : memref<16x16xf32, #tpu.memory_space<vmem>>, vector<16x1xf32>,
    %c0_212 = arith.constant 0 : index
    %c15 = arith.constant 15 : index
    %369 = memref.load %arg2[%c0_212, %c15] : memref<4x16xf32, #tpu.memory_space<smem>>
    %370 = vector.broadcast %369 : f32 to vector<16x256xf32>
    %371 = arith.mulf %2, %370 : vector<16x256xf32>
    %c1_213 = arith.constant 1 : index
    %c15_214 = arith.constant 15 : index
    %372 = memref.load %arg2[%c1_213, %c15_214] : memref<4x16xf32, #tpu.memory_space<smem>>
    %373 = vector.broadcast %372 : f32 to vector<16x256xf32>
    %374 = arith.mulf %4, %373 : vector<16x256xf32>
    %375 = arith.addf %371, %374 : vector<16x256xf32>
    %c2_215 = arith.constant 2 : index
    %c15_216 = arith.constant 15 : index
    %376 = memref.load %arg2[%c2_215, %c15_216] : memref<4x16xf32, #tpu.memory_space<smem>>
    %377 = vector.broadcast %376 : f32 to vector<16x256xf32>
    %378 = arith.mulf %6, %377 : vector<16x256xf32>
    %379 = arith.addf %375, %378 : vector<16x256xf32>
    %c3_217 = arith.constant 3 : index
    %c15_218 = arith.constant 15 : index
    %380 = memref.load %arg2[%c3_217, %c15_218] : memref<4x16xf32, #tpu.memory_space<smem>>
    %381 = vector.broadcast %380 : f32 to vector<16x256xf32>
    %382 = arith.mulf %8, %381 : vector<16x256xf32>
    %383 = arith.addf %379, %382 : vector<16x256xf32>
    %c0_219 = arith.constant 0 : index
    %c15_220 = arith.constant 15 : index
    %384 = memref.load %arg3[%c0_219, %c15_220] : memref<1x16xf32, #tpu.memory_space<smem>>
    %385 = vector.broadcast %384 : f32 to vector<16x256xf32>
    %386 = arith.addf %383, %385 : vector<16x256xf32>
    %cst_221 = arith.constant 0.000000e+00 : f32
    %387 = vector.broadcast %cst_221 : f32 to vector<16x256xf32>
    %388 = arith.maximumf %386, %387 : vector<16x256xf32>
    %c0_222 = arith.constant 0 : index
    %c3840 = arith.constant 3840 : index
    %389 = vector.load %arg8[%c0_222, %c3840] : memref<16x4096xf32, #tpu.memory_space<vmem>>, vector<16x256xf32>
    tpu.vector_store %arg8[%c0_222, %c3840], %388 {strides = array<i32>} : memref<16x4096xf32, #tpu.memory_space<vmem>>, vector<16x256xf32>,
    %cst_223 = arith.constant dense<0.000000e+00> : vector<16xf32>
    %390 = vector.multi_reduction <add>, %388, %cst_223 [1] : vector<16x256xf32> to vector<16xf32>
    %391 = vector.shape_cast %390 : vector<16xf32> to vector<16x1xf32>
    %c0_224 = arith.constant 0 : index
    %c15_225 = arith.constant 15 : index
    %392 = vector.load %arg10[%c0_224, %c15_225] : memref<16x16xf32, #tpu.memory_space<vmem>>, vector<16x1xf32>
    tpu.vector_store %arg10[%c0_224, %c15_225], %391 {strides = array<i32>} : memref<16x16xf32, #tpu.memory_space<vmem>>, vector<16x1xf32>,
    %c0_226 = arith.constant 0 : index
    %c0_227 = arith.constant 0 : index
    %393 = vector.load %arg4[%c0_226, %c0_227] : memref<1024x32xbf16, #tpu.memory_space<vmem>>, vector<1024x32xbf16>
    %cst_228 = arith.constant dense<0.000000e+00> : vector<16x32xf32>
    %394 = tpu.matmul %0, %393, %cst_228 {dimension_numbers = #tpu.dot_dimension_numbers<[1], [0], [0], [1], [0, 0, 1, 1], [], []>} : vector<16x1024xbf16>, vector<1024x32xbf16>, vector<16x32xf32> -> vector<16x32xf32>
    %c0_229 = arith.constant 0 : index
    %c0_230 = arith.constant 0 : index
    %395 = vector.load %arg5[%c0_229, %c0_230] : memref<1x32xf32, #tpu.memory_space<vmem>>, vector<1x32xf32>
    %396 = vector.broadcast %395 : vector<1x32xf32> to vector<16x32xf32>
    %397 = arith.addf %394, %396 : vector<16x32xf32>
    %cst_231 = arith.constant 0.000000e+00 : f32
    %398 = vector.broadcast %cst_231 : f32 to vector<16x32xf32>
    %399 = arith.maximumf %397, %398 : vector<16x32xf32>
    %400 = arith.truncf %399 : vector<16x32xf32> to vector<16x32xbf16>
    %c0_232 = arith.constant 0 : index
    %c0_233 = arith.constant 0 : index
    %401 = vector.load %arg6[%c0_232, %c0_233] : memref<32x16xbf16, #tpu.memory_space<vmem>>, vector<32x16xbf16>
    %cst_234 = arith.constant dense<0.000000e+00> : vector<16x16xf32>
    %402 = tpu.matmul %400, %401, %cst_234 {dimension_numbers = #tpu.dot_dimension_numbers<[1], [0], [0], [1], [0, 0, 1, 1], [], []>} : vector<16x32xbf16>, vector<32x16xbf16>, vector<16x16xf32> -> vector<16x16xf32>
    %c0_235 = arith.constant 0 : index
    %c0_236 = arith.constant 0 : index
    %403 = vector.load %arg7[%c0_235, %c0_236] : memref<1x16xf32, #tpu.memory_space<vmem>>, vector<1x16xf32>
    %404 = vector.broadcast %403 : vector<1x16xf32> to vector<16x16xf32>
    %405 = arith.addf %402, %404 : vector<16x16xf32>
    %cst_237 = arith.constant 0.000000e+00 : f32
    %406 = vector.broadcast %cst_237 : f32 to vector<16x16xf32>
    %407 = arith.maximumf %405, %406 : vector<16x16xf32>
    %c0_238 = arith.constant 0 : index
    %c0_239 = arith.constant 0 : index
    %408 = vector.load %arg10[%c0_238, %c0_239] : memref<16x16xf32, #tpu.memory_space<vmem>>, vector<16x16xf32>
    %cst_240 = arith.constant 3.906250e-03 : f32
    %409 = vector.broadcast %cst_240 : f32 to vector<16x16xf32>
    %410 = arith.mulf %408, %409 : vector<16x16xf32>
    %411 = arith.addf %407, %410 : vector<16x16xf32>
    %c0_241 = arith.constant 0 : index
    %c0_242 = arith.constant 0 : index
    %412 = vector.load %arg9[%c0_241, %c0_242] : memref<16x16xf32, #tpu.memory_space<vmem>>, vector<16x16xf32>
    tpu.vector_store %arg9[%c0_241, %c0_242], %411 {strides = array<i32>} : memref<16x16xf32, #tpu.memory_space<vmem>>, vector<16x16xf32>,
    return
  }
  func.func @transform_0(%arg0: i32) -> (i32, i32) {
    %c0_i32 = arith.constant 0 : i32
    %c0_i32_0 = arith.constant 0 : i32
    return %arg0, %c0_i32 : i32, i32
  }
  func.func @transform_1(%arg0: i32) -> (i32, i32) {
    %c0_i32 = arith.constant 0 : i32
    %c0_i32_0 = arith.constant 0 : i32
    %c0_i32_1 = arith.constant 0 : i32
    return %c0_i32, %c0_i32_0 : i32, i32
  }
  func.func @transform_2(%arg0: i32) -> (i32, i32) {
    %c0_i32 = arith.constant 0 : i32
    %c0_i32_0 = arith.constant 0 : i32
    %c0_i32_1 = arith.constant 0 : i32
    return %c0_i32, %c0_i32_0 : i32, i32
  }
  func.func @transform_3(%arg0: i32) -> (i32, i32) {
    %c0_i32 = arith.constant 0 : i32
    %c0_i32_0 = arith.constant 0 : i32
    %c0_i32_1 = arith.constant 0 : i32
    return %c0_i32, %c0_i32_0 : i32, i32
  }
  func.func @transform_4(%arg0: i32) -> (i32, i32) {
    %c0_i32 = arith.constant 0 : i32
    %c0_i32_0 = arith.constant 0 : i32
    %c0_i32_1 = arith.constant 0 : i32
    return %c0_i32, %c0_i32_0 : i32, i32
  }
  func.func @transform_5(%arg0: i32) -> (i32, i32) {
    %c0_i32 = arith.constant 0 : i32
    %c0_i32_0 = arith.constant 0 : i32
    %c0_i32_1 = arith.constant 0 : i32
    return %c0_i32, %c0_i32_0 : i32, i32
  }
  func.func @transform_6(%arg0: i32) -> (i32, i32) {
    %c0_i32 = arith.constant 0 : i32
    %c0_i32_0 = arith.constant 0 : i32
    %c0_i32_1 = arith.constant 0 : i32
    return %c0_i32, %c0_i32_0 : i32, i32
  }
  func.func @transform_7(%arg0: i32) -> (i32, i32) {
    %c0_i32 = arith.constant 0 : i32
    %c0_i32_0 = arith.constant 0 : i32
    return %arg0, %c0_i32 : i32, i32
  }
  func.func @transform_8(%arg0: i32) -> (i32, i32) {
    %c0_i32 = arith.constant 0 : i32
    %c0_i32_0 = arith.constant 0 : i32
    return %arg0, %c0_i32 : i32, i32
  }
}

</mosaic_0001>

<llo_original>
// kernel: fast_rcnn_conv_pooling_head.1
$region0: #{fast_rcnn_conv_pooling_head.1}
  #allocation0 [shape = 'u32[]', space=smem, size = 0x4, offset = 0x4, fixed_abs, tag = 'smem constant byte address 0x4 - core index']
  #allocation1 [shape = 'u32[144,128]{1,0:T(1,128)}', space=vmem, size = 0x12000, scoped, tag = 'internal scratch']
  #allocation2 [shape = 'f32[16,16]{1,0:T(8,128)}', space=vmem, size = 0x2000, scoped, tag = 'scratch operand']
  %s0 = inlined_call_operand.vmem [shape: bf16[32,1024], index: 0, kind: input, shape index: {}]
  %s1 = inlined_call_operand.hbm [shape: f32[4,16], index: 1, kind: input, shape index: {}]
  %s2 = inlined_call_operand.hbm [shape: f32[1,16], index: 2, kind: input, shape index: {}]
  %s3 = inlined_call_operand.vmem [shape: bf16[1024,32], index: 3, kind: input, shape index: {}]
  %s4 = inlined_call_operand.hbm [shape: f32[1,32], index: 4, kind: input, shape index: {}]
  %s5 = inlined_call_operand.vmem [shape: bf16[32,16], index: 5, kind: input, shape index: {}]
  %s6 = inlined_call_operand.hbm [shape: f32[1,16], index: 6, kind: input, shape index: {}]
  %s7 = inlined_call_operand.vmem [shape: f32[32,4096], index: 7, kind: output, shape index: {0}]
  %s8 = inlined_call_operand.vmem [shape: f32[32,16], index: 8, kind: output, shape index: {1}]
  %9 = xla_tuple %s7, %s8
  %s10 = sld [smem:[#allocation0]]
  $region85: #{fast_rcnn_conv_pooling_head.1} parent=0
    _
  %s12 = ssub.s32 1, %s10
  %s13 = scalar_select 0, %s12, %s10
  $region1: #{fast_rcnn_conv_pooling_head.1} parent=0
    #allocation3 [shape = 'u8[2048]{0}', space=smem, size = 0x800, scoped, tag = 'input window, operand 1, single buffered']
    #allocation4 [shape = 's32[2]{0}', space=sflag, size = 0x8, scoped, tag = 'scoped memory for fast_rcnn_conv_pooling_head.1']
    #allocation5 [shape = 's32[2]{0}', space=sflag, size = 0x8, scoped, tag = 'scoped memory for fast_rcnn_conv_pooling_head.1']
    #allocation6 [shape = 'u8[512]{0}', space=smem, size = 0x200, scoped, tag = 'input window, operand 2, single buffered']
    #allocation7 [shape = 's32[1]{0}', space=sflag, size = 0x4, scoped, tag = 'scoped memory for fast_rcnn_conv_pooling_head.1']
    #allocation8 [shape = 'u8[512]{0}', space=vmem, size = 0x400, scoped, tag = 'input window, operand 4, single buffered']
    #allocation9 [shape = 'u8[512]{0}', space=vmem, size = 0x400, scoped, tag = 'input window, operand 6, single buffered']
    #allocation10 [shape = 's32[1]{0}', space=sflag, size = 0x4, scoped, tag = 'scoped memory for fast_rcnn_conv_pooling_head.1']
    %14 = vsyncpa [#allocation5], 0
    %15 = vsyncpa [#allocation7], 0
    %16 = vsyncpa [#allocation4], 0
    %17 = vsyncpa [#allocation10], 0
    loop: start=0, step=1, limit=4
    $region2: #{fast_rcnn_conv_pooling_head.1} parent=1 // loop_pre_header
      _
    $region3: #{fast_rcnn_conv_pooling_head.1} parent=1 // loop_header
      %s19 = sphi 0, %s23
      %p20 = scmp.ge.s32.totalorder %s19, 4
      %s29 = sphi 0, %s31
      %s32 = sphi 0, %s29
      %s33 = sphi 0, %s32
      %s49 = sphi 0, %s33
      %s53 = sphi 0, %s53
      %s55 = sphi 0, %s53
      %s56 = sphi 0, %s55
      %s70 = sphi 0, %s56
      %s74 = sphi 0, %s74
      %s76 = sphi 0, %s74
      %s77 = sphi 0, %s76
      %s91 = sphi 0, %s77
      %s95 = sphi 0, %s95
      %s97 = sphi 0, %s95
      %s98 = sphi 0, %s97
      %s112 = sphi 0, %s98
      %s116 = sphi 0, %s116
      %s118 = sphi 0, %s116
      %s119 = sphi 0, %s118
      %s133 = sphi 0, %s119
      %s137 = sphi 0, %s137
      %s139 = sphi 0, %s137
      %s140 = sphi 0, %s139
      %s154 = sphi 0, %s140
      %s158 = sphi 0, %s158
      %s160 = sphi 0, %s158
      %s161 = sphi 0, %s160
      %s175 = sphi 0, %s161
      %s181 = sphi 0, %s183
      %s184 = sphi 0, %s181
      %s185 = sphi 0, %s184
      %s201 = sphi 0, %s185
      %s207 = sphi 0, %s209
      %s210 = sphi 0, %s207
      %s211 = sphi 0, %s210
      %s227 = sphi 0, %s211
    $region4: #{fast_rcnn_conv_pooling_head.1} parent=1 // loop_header_branch
      %22 = sbr.rel (%p20) target = $region8
    $region5: #{fast_rcnn_conv_pooling_head.1} parent=1 // loop_body
      %s24 = ssub.s32 %s19, 1
      %s25 = ssub.s32 %s19, 2
      %s26 = sadd.s32 %s19, 1
      %s27 = ssub.s32 %s19, %s26
      %p28 = scmp.eq.s32.totalorder %s27, 0
      %s30 = sadd.s32 %s29, 1
      %s31 = scalar_select %p28, %s29, %s30
      %p34 = pneg %p28
      %p35 = scmp.eq.s32.totalorder %s19, 1
      %p36 = por %p34, %p35
      %p37 = scmp.ne.s32.totalorder %s29, %s32
      %p38 = scmp.eq.s32.totalorder %s19, 0
      %p39 = por %p37, %p38
      %p40 = scmp.ne.s32.totalorder %s29, %s32
      %p41 = scmp.eq.s32.totalorder %s24, 1
      %p42 = por %p40, %p41
      %p43 = scmp.ne.s32.totalorder %s32, %s33
      %p44 = scmp.eq.s32.totalorder %s24, 0
      %p45 = por %p43, %p44
      %p46 = scmp.ne.s32.totalorder %s32, %s33
      %p47 = scmp.eq.s32.totalorder %s25, 1
      %p48 = por %p46, %p47
      %p50 = scmp.ne.s32.totalorder %s33, %s49
      %p51 = scmp.eq.s32.totalorder %s25, 0
      %p52 = por %p50, %p51
      %s54 = sadd.s32 %s53, 1
      %p57 = scmp.eq.s32.totalorder %s19, 1
      %p58 = scmp.ne.s32.totalorder %s53, %s55
      %p59 = scmp.eq.s32.totalorder %s19, 0
      %p60 = por %p58, %p59
      %p61 = scmp.ne.s32.totalorder %s53, %s55
      %p62 = scmp.eq.s32.totalorder %s24, 1
      %p63 = por %p61, %p62
      %p64 = scmp.ne.s32.totalorder %s55, %s56
      %p65 = scmp.eq.s32.totalorder %s24, 0
      %p66 = por %p64, %p65
      %p67 = scmp.ne.s32.totalorder %s55, %s56
      %p68 = scmp.eq.s32.totalorder %s25, 1
      %p69 = por %p67, %p68
      %p71 = scmp.ne.s32.totalorder %s56, %s70
      %p72 = scmp.eq.s32.totalorder %s25, 0
      %p73 = por %p71, %p72
      %s75 = sadd.s32 %s74, 1
      %p78 = scmp.eq.s32.totalorder %s19, 1
      %p79 = scmp.ne.s32.totalorder %s74, %s76
      %p80 = scmp.eq.s32.totalorder %s19, 0
      %p81 = por %p79, %p80
      %p82 = scmp.ne.s32.totalorder %s74, %s76
      %p83 = scmp.eq.s32.totalorder %s24, 1
      %p84 = por %p82, %p83
      %p85 = scmp.ne.s32.totalorder %s76, %s77
      %p86 = scmp.eq.s32.totalorder %s24, 0
      %p87 = por %p85, %p86
      %p88 = scmp.ne.s32.totalorder %s76, %s77
      %p89 = scmp.eq.s32.totalorder %s25, 1
      %p90 = por %p88, %p89
      %p92 = scmp.ne.s32.totalorder %s77, %s91
      %p93 = scmp.eq.s32.totalorder %s25, 0
      %p94 = por %p92, %p93
      %s96 = sadd.s32 %s95, 1
      %p99 = scmp.eq.s32.totalorder %s19, 1
      %p100 = scmp.ne.s32.totalorder %s95, %s97
      %p101 = scmp.eq.s32.totalorder %s19, 0
      %p102 = por %p100, %p101
      %p103 = scmp.ne.s32.totalorder %s95, %s97
      %p104 = scmp.eq.s32.totalorder %s24, 1
      %p105 = por %p103, %p104
      %p106 = scmp.ne.s32.totalorder %s97, %s98
      %p107 = scmp.eq.s32.totalorder %s24, 0
      %p108 = por %p106, %p107
      %p109 = scmp.ne.s32.totalorder %s97, %s98
      %p110 = scmp.eq.s32.totalorder %s25, 1
      %p111 = por %p109, %p110
      %p113 = scmp.ne.s32.totalorder %s98, %s112
      %p114 = scmp.eq.s32.totalorder %s25, 0
      %p115 = por %p113, %p114
      %s117 = sadd.s32 %s116, 1
      %p120 = scmp.eq.s32.totalorder %s19, 1
      %p121 = scmp.ne.s32.totalorder %s116, %s118
      %p122 = scmp.eq.s32.totalorder %s19, 0
      %p123 = por %p121, %p122
      %p124 = scmp.ne.s32.totalorder %s116, %s118
      %p125 = scmp.eq.s32.totalorder %s24, 1
      %p126 = por %p124, %p125
      %p127 = scmp.ne.s32.totalorder %s118, %s119
      %p128 = scmp.eq.s32.totalorder %s24, 0
      %p129 = por %p127, %p128
      %p130 = scmp.ne.s32.totalorder %s118, %s119
      %p131 = scmp.eq.s32.totalorder %s25, 1
      %p132 = por %p130, %p131
      %p134 = scmp.ne.s32.totalorder %s119, %s133
      %p135 = scmp.eq.s32.totalorder %s25, 0
      %p136 = por %p134, %p135
      %s138 = sadd.s32 %s137, 1
      %p141 = scmp.eq.s32.totalorder %s19, 1
      %p142 = scmp.ne.s32.totalorder %s137, %s139
      %p143 = scmp.eq.s32.totalorder %s19, 0
      %p144 = por %p142, %p143
      %p145 = scmp.ne.s32.totalorder %s137, %s139
      %p146 = scmp.eq.s32.totalorder %s24, 1
      %p147 = por %p145, %p146
      %p148 = scmp.ne.s32.totalorder %s139, %s140
      %p149 = scmp.eq.s32.totalorder %s24, 0
      %p150 = por %p148, %p149
      %p151 = scmp.ne.s32.totalorder %s139, %s140
      %p152 = scmp.eq.s32.totalorder %s25, 1
      %p153 = por %p151, %p152
      %p155 = scmp.ne.s32.totalorder %s140, %s154
      %p156 = scmp.eq.s32.totalorder %s25, 0
      %p157 = por %p155, %p156
      %s159 = sadd.s32 %s158, 1
      %p162 = scmp.eq.s32.totalorder %s19, 1
      %p163 = scmp.ne.s32.totalorder %s158, %s160
      %p164 = scmp.eq.s32.totalorder %s19, 0
      %p165 = por %p163, %p164
      %p166 = scmp.ne.s32.totalorder %s158, %s160
      %p167 = scmp.eq.s32.totalorder %s24, 1
      %p168 = por %p166, %p167
      %p169 = scmp.ne.s32.totalorder %s160, %s161
      %p170 = scmp.eq.s32.totalorder %s24, 0
      %p171 = por %p169, %p170
      %p172 = scmp.ne.s32.totalorder %s160, %s161
      %p173 = scmp.eq.s32.totalorder %s25, 1
      %p174 = por %p172, %p173
      %p176 = scmp.ne.s32.totalorder %s161, %s175
      %p177 = scmp.eq.s32.totalorder %s25, 0
      %p178 = por %p176, %p177
      %s179 = ssub.s32 %s19, %s26
      %p180 = scmp.eq.s32.totalorder %s179, 0
      %s182 = sadd.s32 %s181, 1
      %s183 = scalar_select %p180, %s181, %s182
      %p186 = pneg %p180
      %p187 = scmp.eq.s32.totalorder %s19, 1
      %p188 = por %p186, %p187
      %p189 = scmp.ne.s32.totalorder %s181, %s184
      %p190 = scmp.eq.s32.totalorder %s19, 0
      %p191 = por %p189, %p190
      %p192 = scmp.ne.s32.totalorder %s181, %s184
      %p193 = scmp.eq.s32.totalorder %s24, 1
      %p194 = por %p192, %p193
      %p195 = scmp.ne.s32.totalorder %s184, %s185
      %p196 = scmp.eq.s32.totalorder %s24, 0
      %p197 = por %p195, %p196
      %p198 = scmp.ne.s32.totalorder %s184, %s185
      %p199 = scmp.eq.s32.totalorder %s25, 1
      %p200 = por %p198, %p199
      %p202 = scmp.ne.s32.totalorder %s185, %s201
      %p203 = scmp.eq.s32.totalorder %s25, 0
      %p204 = por %p202, %p203
      %s205 = ssub.s32 %s19, %s26
      %p206 = scmp.eq.s32.totalorder %s205, 0
      %s208 = sadd.s32 %s207, 1
      %s209 = scalar_select %p206, %s207, %s208
      %p212 = pneg %p206
      %p213 = scmp.eq.s32.totalorder %s19, 1
      %p214 = por %p212, %p213
      %p215 = scmp.ne.s32.totalorder %s207, %s210
      %p216 = scmp.eq.s32.totalorder %s19, 0
      %p217 = por %p215, %p216
      %p218 = scmp.ne.s32.totalorder %s207, %s210
      %p219 = scmp.eq.s32.totalorder %s24, 1
      %p220 = por %p218, %p219
      %p221 = scmp.ne.s32.totalorder %s210, %s211
      %p222 = scmp.eq.s32.totalorder %s24, 0
      %p223 = por %p221, %p222
      %p224 = scmp.ne.s32.totalorder %s210, %s211
      %p225 = scmp.eq.s32.totalorder %s25, 1
      %p226 = por %p224, %p225
      %p228 = scmp.ne.s32.totalorder %s211, %s227
      %p229 = scmp.eq.s32.totalorder %s25, 0
      %p230 = por %p228, %p229
      %p231 = scmp.le.s32.totalorder 1, %s19
      %p232 = scmp.lt.s32.totalorder %s19, 3
      %p233 = pnand %p231, %p232
      %p234 = pneg %p233
      // Predicated region
      $region9: #{fast_rcnn_conv_pooling_head.1} parent=5 // pred_check
        _
      $region10: #{fast_rcnn_conv_pooling_head.1} parent=5 // pred_check_branch
        %236 = sbr.rel (%p233) target = $region12
      $region11: #{fast_rcnn_conv_pooling_head.1} parent=5 // pred_region
        %s237 = ssub.s32 %s19, 1
        // Predicated region
        $region13: #{fast_rcnn_conv_pooling_head.1} parent=11 // pred_check
          %p238 = pneg %p66
        $region14: #{fast_rcnn_conv_pooling_head.1} parent=11 // pred_check_branch
          %240 = sbr.rel (%p238) target = $region16
        $region15: #{fast_rcnn_conv_pooling_head.1} parent=11 // pred_region
          %s242 = ssub.s32 64, 64
          %243 = vsyncadd [#allocation5], %s242
          %246 = dma.hbm_to_smem %s1, 64, [#allocation3], [#allocation5]
        $region16: #{fast_rcnn_conv_pooling_head.1} parent=11 // pred_fallthru
          _
        // Predicated region
        $region17: #{fast_rcnn_conv_pooling_head.1} parent=11 // pred_check
          %p247 = pneg %p87
        $region18: #{fast_rcnn_conv_pooling_head.1} parent=11 // pred_check_branch
          %249 = sbr.rel (%p247) target = $region20
        $region19: #{fast_rcnn_conv_pooling_head.1} parent=11 // pred_region
          %s251 = ssub.s32 16, 16
          %252 = vsyncadd [#allocation7], %s251
          %255 = dma.hbm_to_smem %s2, 16, [#allocation6], [#allocation7]
        $region20: #{fast_rcnn_conv_pooling_head.1} parent=11 // pred_fallthru
          _
        // Predicated region
        $region21: #{fast_rcnn_conv_pooling_head.1} parent=11 // pred_check
          %p256 = pneg %p108
        $region22: #{fast_rcnn_conv_pooling_head.1} parent=11 // pred_check_branch
          %258 = sbr.rel (%p256) target = $region24
        $region23: #{fast_rcnn_conv_pooling_head.1} parent=11 // pred_region
          _
        $region24: #{fast_rcnn_conv_pooling_head.1} parent=11 // pred_fallthru
          _
        // Predicated region
        $region25: #{fast_rcnn_conv_pooling_head.1} parent=11 // pred_check
          %p259 = pneg %p129
        $region26: #{fast_rcnn_conv_pooling_head.1} parent=11 // pred_check_branch
          %261 = sbr.rel (%p259) target = $region28
        $region27: #{fast_rcnn_conv_pooling_head.1} parent=11 // pred_region
          %s263 = ssub.s32 16, 16
          %264 = vsyncadd [#allocation4], %s263
          %s266 = sshll.u32 [#allocation8], 4
          %s267 = int_to_ptr.vmem [resolvable:$true] %s266
          %269 = dma.hbm_to_vmem [thread:$0]  %s4, 16, %s267, [#allocation4]
        $region28: #{fast_rcnn_conv_pooling_head.1} parent=11 // pred_fallthru
          _
        // Predicated region
        $region29: #{fast_rcnn_conv_pooling_head.1} parent=11 // pred_check
          %p270 = pneg %p150
        $region30: #{fast_rcnn_conv_pooling_head.1} parent=11 // pred_check_branch
          %272 = sbr.rel (%p270) target = $region32
        $region31: #{fast_rcnn_conv_pooling_head.1} parent=11 // pred_region
          _
        $region32: #{fast_rcnn_conv_pooling_head.1} parent=11 // pred_fallthru
          _
        // Predicated region
        $region33: #{fast_rcnn_conv_pooling_head.1} parent=11 // pred_check
          %p273 = pneg %p171
        $region34: #{fast_rcnn_conv_pooling_head.1} parent=11 // pred_check_branch
          %275 = sbr.rel (%p273) target = $region36
        $region35: #{fast_rcnn_conv_pooling_head.1} parent=11 // pred_region
          %s277 = ssub.s32 16, 16
          %278 = vsyncadd [#allocation10], %s277
          %s280 = sshll.u32 [#allocation9], 4
          %s281 = int_to_ptr.vmem [resolvable:$true] %s280
          %283 = dma.hbm_to_vmem [thread:$0]  %s6, 16, %s281, [#allocation10]
        $region36: #{fast_rcnn_conv_pooling_head.1} parent=11 // pred_fallthru
          _
      $region12: #{fast_rcnn_conv_pooling_head.1} parent=5 // pred_fallthru
        _
      %p284 = scmp.lt.s32.totalorder %s19, 2
      // Predicated region
      $region37: #{fast_rcnn_conv_pooling_head.1} parent=5 // pred_check
        %p285 = pneg %p284
      $region38: #{fast_rcnn_conv_pooling_head.1} parent=5 // pred_check_branch
        %287 = sbr.rel (%p285) target = $region40
      $region39: #{fast_rcnn_conv_pooling_head.1} parent=5 // pred_region
        // Predicated region
        $region41: #{fast_rcnn_conv_pooling_head.1} parent=39 // pred_check
          %p288 = pneg %p39
        $region42: #{fast_rcnn_conv_pooling_head.1} parent=39 // pred_check_branch
          %290 = sbr.rel (%p288) target = $region44
        $region43: #{fast_rcnn_conv_pooling_head.1} parent=39 // pred_region
          %s291 = smul.u32 2, %s19
          %p292 = scmp.lt.s32.totalorder %s291, 3
          %s293 = scalar_select %p292, %s291, 3
          %s294 = smul.addr %s293, 8
          %s295 = smul.addr %s294, 4
          %s296 = scalar_lea.vmem %s0, %s295
          %s297 = smul.u32 2, %s19
        $region44: #{fast_rcnn_conv_pooling_head.1} parent=39 // pred_fallthru
          _
      $region40: #{fast_rcnn_conv_pooling_head.1} parent=5 // pred_fallthru
        _
      %p298 = scmp.le.s32.totalorder 1, %s19
      %p299 = scmp.lt.s32.totalorder %s19, 3
      %p300 = pnand %p298, %p299
      %p301 = pneg %p300
      // Predicated region
      $region45: #{fast_rcnn_conv_pooling_head.1} parent=5 // pred_check
        _
      $region46: #{fast_rcnn_conv_pooling_head.1} parent=5 // pred_check_branch
        %303 = sbr.rel (%p300) target = $region48
      $region47: #{fast_rcnn_conv_pooling_head.1} parent=5 // pred_region
        %s304 = ssub.s32 %s19, 1
        // Predicated region
        $region49: #{fast_rcnn_conv_pooling_head.1} parent=47 // pred_check
          %p305 = pneg %p66
        $region50: #{fast_rcnn_conv_pooling_head.1} parent=47 // pred_check_branch
          %307 = sbr.rel (%p305) target = $region52
        $region51: #{fast_rcnn_conv_pooling_head.1} parent=47 // pred_region
          %308 = dma.done [#allocation5], 64
        $region52: #{fast_rcnn_conv_pooling_head.1} parent=47 // pred_fallthru
          _
        // Predicated region
        $region53: #{fast_rcnn_conv_pooling_head.1} parent=47 // pred_check
          %p309 = pneg %p87
        $region54: #{fast_rcnn_conv_pooling_head.1} parent=47 // pred_check_branch
          %311 = sbr.rel (%p309) target = $region56
        $region55: #{fast_rcnn_conv_pooling_head.1} parent=47 // pred_region
          %312 = dma.done [#allocation7], 16
        $region56: #{fast_rcnn_conv_pooling_head.1} parent=47 // pred_fallthru
          _
        // Predicated region
        $region57: #{fast_rcnn_conv_pooling_head.1} parent=47 // pred_check
          %p313 = pneg %p129
        $region58: #{fast_rcnn_conv_pooling_head.1} parent=47 // pred_check_branch
          %315 = sbr.rel (%p313) target = $region60
        $region59: #{fast_rcnn_conv_pooling_head.1} parent=47 // pred_region
          %316 = dma.done [#allocation4], 16
        $region60: #{fast_rcnn_conv_pooling_head.1} parent=47 // pred_fallthru
          _
        // Predicated region
        $region61: #{fast_rcnn_conv_pooling_head.1} parent=47 // pred_check
          %p317 = pneg %p171
        $region62: #{fast_rcnn_conv_pooling_head.1} parent=47 // pred_check_branch
          %319 = sbr.rel (%p317) target = $region64
        $region63: #{fast_rcnn_conv_pooling_head.1} parent=47 // pred_region
          %320 = dma.done [#allocation10], 16
        $region64: #{fast_rcnn_conv_pooling_head.1} parent=47 // pred_fallthru
          _
        %321 = sfence
        %s322 = smul.u32 2, %s24
        %p323 = scmp.lt.s32.totalorder %s322, 3
        %s324 = scalar_select %p323, %s322, 3
        %s325 = smul.addr %s324, 8
        %s326 = smul.addr %s325, 4
        %s327 = scalar_lea.vmem %s0, %s326
        %p328 = pneg %p45
        %p329 = pneg %p42
        %p330 = pneg %p66
        %p331 = pneg %p63
        %p332 = pneg %p87
        %p333 = pneg %p84
        %p334 = pneg %p108
        %p335 = pneg %p105
        %p336 = pneg %p129
        %p337 = pneg %p126
        %p338 = pneg %p150
        %p339 = pneg %p147
        %p340 = pneg %p171
        %p341 = pneg %p168
        %p342 = pneg %p197
        %p343 = pneg %p194
        %s344 = smul.u32 2, %s24
        %p345 = scmp.lt.s32.totalorder %s344, 3
        %s346 = scalar_select %p345, %s344, 3
        %s347 = smul.addr %s346, 32
        %s348 = smul.addr %s347, 8
        %s349 = scalar_lea.vmem %s7, %s348
        %p350 = pneg %p223
        %p351 = pneg %p220
        %s352 = smul.u32 2, %s24
        %p353 = scmp.lt.s32.totalorder %s352, 3
        %s354 = scalar_select %p353, %s352, 3
        %s355 = smul.addr %s354, 8
        %s356 = scalar_lea.vmem %s8, %s355
        %s357 = smul.u32 2, %s24
        %p358 = scmp.lt.s32.totalorder %s357, 3
        %s359 = scalar_select %p358, %s357, 3
        %s360 = smul.addr %s359, 8
        %s361 = smul.addr %s360, 4
        %s362 = scalar_lea.vmem %s0, %s361
        %s363 = smul.u32 2, %s24
        %s364 = smul.u32 2, %s24
        %p365 = scmp.lt.s32.totalorder %s364, 3
        %s366 = scalar_select %p365, %s364, 3
        %s367 = smul.addr %s366, 32
        %s368 = smul.addr %s367, 8
        %s369 = scalar_lea.vmem %s7, %s368
        %s370 = smul.u32 2, %s24
        %s371 = smul.u32 2, %s24
        %p372 = scmp.lt.s32.totalorder %s371, 3
        %s373 = scalar_select %p372, %s371, 3
        %s374 = smul.addr %s373, 8
        %s375 = scalar_lea.vmem %s8, %s374
        %s376 = smul.u32 2, %s24
        %v378 = vld [vmem:[%s362] sm:$0xff]
        %v379 = vld [vmem:[%s362 + $0x8] sm:$0xff]
        %v380 = vld [vmem:[%s362 + $0x10] sm:$0xff]
        %v381 = vld [vmem:[%s362 + $0x18] sm:$0xff]
        %v382 = vld [vmem:[%s362 + $0x20] sm:$0xff]
        %v383 = vld [vmem:[%s362 + $0x28] sm:$0xff]
        %v384 = vld [vmem:[%s362 + $0x30] sm:$0xff]
        %v385 = vld [vmem:[%s362 + $0x38] sm:$0xff]
        %v386 = vunpack.c.l.bf16 %v378
        %v387 = vunpack.c.h.bf16 %v378
        %v388 = vunpack.c.l.bf16 %v382
        %v389 = vunpack.c.h.bf16 %v382
        %v390 = vunpack.c.l.bf16 %v379
        %v391 = vunpack.c.h.bf16 %v379
        %v392 = vunpack.c.l.bf16 %v383
        %v393 = vunpack.c.h.bf16 %v383
        %v394 = vunpack.c.l.bf16 %v380
        %v395 = vunpack.c.h.bf16 %v380
        %v396 = vunpack.c.l.bf16 %v384
        %v397 = vunpack.c.h.bf16 %v384
        %v398 = vunpack.c.l.bf16 %v381
        %v399 = vunpack.c.h.bf16 %v381
        %v400 = vunpack.c.l.bf16 %v385
        %v401 = vunpack.c.h.bf16 %v385
        %s402 = sld [smem:[#allocation3]]
        %v403 = vstv %s402
        %v404 = vmul.f32 %v386, %v403
        %v405 = vmul.f32 %v387, %v403
        %v406 = vmul.f32 %v388, %v403
        %v407 = vmul.f32 %v389, %v403
        %s408 = sld [smem:[#allocation3 + $0x80]]
        %v409 = vstv %s408
        %v410 = vmul.f32 %v390, %v409
        %v411 = vmul.f32 %v391, %v409
        %v412 = vmul.f32 %v392, %v409
        %v413 = vmul.f32 %v393, %v409
        %v414 = vadd.f32 %v404, %v410
        %v415 = vadd.f32 %v405, %v411
        %v416 = vadd.f32 %v406, %v412
        %v417 = vadd.f32 %v407, %v413
        %s418 = sld [smem:[#allocation3 + $0x100]]
        %v419 = vstv %s418
        %v420 = vmul.f32 %v394, %v419
        %v421 = vmul.f32 %v395, %v419
        %v422 = vmul.f32 %v396, %v419
        %v423 = vmul.f32 %v397, %v419
        %v424 = vadd.f32 %v414, %v420
        %v425 = vadd.f32 %v415, %v421
        %v426 = vadd.f32 %v416, %v422
        %v427 = vadd.f32 %v417, %v423
        %s428 = sld [smem:[#allocation3 + $0x180]]
        %v429 = vstv %s428
        %v430 = vmul.f32 %v398, %v429
        %v431 = vmul.f32 %v399, %v429
        %v432 = vmul.f32 %v400, %v429
        %v433 = vmul.f32 %v401, %v429
        %v434 = vadd.f32 %v424, %v430
        %v435 = vadd.f32 %v425, %v431
        %v436 = vadd.f32 %v426, %v432
        %v437 = vadd.f32 %v427, %v433
        %s438 = sld [smem:[#allocation6]]
        %v439 = vstv %s438
        %v440 = vadd.f32 %v434, %v439
        %v441 = vadd.f32 %v435, %v439
        %v442 = vadd.f32 %v436, %v439
        %v443 = vadd.f32 %v437, %v439
        %v444 = vmax.f32 %v440, 0.0
        %v445 = vmax.f32 %v441, 0.0
        %v446 = vmax.f32 %v442, 0.0
        %v447 = vmax.f32 %v443, 0.0
        %448 = vst [vmem:[%s369] sm:$0xff] %v444
        %449 = vst [vmem:[%s369 + $0x8] sm:$0xff] %v445
        %450 = vst [vmem:[%s369 + $0x100] sm:$0xff] %v446
        %451 = vst [vmem:[%s369 + $0x108] sm:$0xff] %v447
        %v452 = vadd.f32 %v444, %v445
        %453 = vadd.xlane.f32.xlu0 %v452
        %v454 = vpop.xlane.xlu0 %453
        %v455 = vadd.f32 %v446, %v447
        %456 = vadd.xlane.f32.xlu0 %v455
        %v457 = vpop.xlane.xlu0 %456
        %vm458 = vcmask 7168
        %459 = vst.msk [vmem:[#allocation2] sm:$0xff] %vm458, %v454
        %460 = vst.msk [vmem:[#allocation2 + $0x8] sm:$0xff] %vm458, %v457
        %s461 = sld [smem:[#allocation3 + $0x1]]
        %v462 = vstv %s461
        %v463 = vmul.f32 %v386, %v462
        %v464 = vmul.f32 %v387, %v462
        %v465 = vmul.f32 %v388, %v462
        %v466 = vmul.f32 %v389, %v462
        %s467 = sld [smem:[#allocation3 + $0x81]]
        %v468 = vstv %s467
        %v469 = vmul.f32 %v390, %v468
        %v470 = vmul.f32 %v391, %v468
        %v471 = vmul.f32 %v392, %v468
        %v472 = vmul.f32 %v393, %v468
        %v473 = vadd.f32 %v463, %v469
        %v474 = vadd.f32 %v464, %v470
        %v475 = vadd.f32 %v465, %v471
        %v476 = vadd.f32 %v466, %v472
        %s477 = sld [smem:[#allocation3 + $0x101]]
        %v478 = vstv %s477
        %v479 = vmul.f32 %v394, %v478
        %v480 = vmul.f32 %v395, %v478
        %v481 = vmul.f32 %v396, %v478
        %v482 = vmul.f32 %v397, %v478
        %v483 = vadd.f32 %v473, %v479
        %v484 = vadd.f32 %v474, %v480
        %v485 = vadd.f32 %v475, %v481
        %v486 = vadd.f32 %v476, %v482
        %s487 = sld [smem:[#allocation3 + $0x181]]
        %v488 = vstv %s487
        %v489 = vmul.f32 %v398, %v488
        %v490 = vmul.f32 %v399, %v488
        %v491 = vmul.f32 %v400, %v488
        %v492 = vmul.f32 %v401, %v488
        %v493 = vadd.f32 %v483, %v489
        %v494 = vadd.f32 %v484, %v490
        %v495 = vadd.f32 %v485, %v491
        %v496 = vadd.f32 %v486, %v492
        %s497 = sld [smem:[#allocation6 + $0x1]]
        %v498 = vstv %s497
        %v499 = vadd.f32 %v493, %v498
        %v500 = vadd.f32 %v494, %v498
        %v501 = vadd.f32 %v495, %v498
        %v502 = vadd.f32 %v496, %v498
        %v503 = vmax.f32 %v499, 0.0
        %v504 = vmax.f32 %v500, 0.0
        %v505 = vmax.f32 %v501, 0.0
        %v506 = vmax.f32 %v502, 0.0
        %507 = vst [vmem:[%s369 + $0x10] sm:$0xff] %v503
        %508 = vst [vmem:[%s369 + $0x18] sm:$0xff] %v504
        %509 = vst [vmem:[%s369 + $0x110] sm:$0xff] %v505
        %510 = vst [vmem:[%s369 + $0x118] sm:$0xff] %v506
        %v511 = vadd.f32 %v503, %v504
        %512 = vadd.xlane.f32.xlu0 %v511
        %v513 = vpop.xlane.xlu0 %512
        %v514 = vadd.f32 %v505, %v506
        %515 = vadd.xlane.f32.xlu0 %v514
        %v516 = vpop.xlane.xlu0 %515
        %vm517 = vcmask 15368
        %518 = vst.msk [vmem:[#allocation2] sm:$0xff] %vm517, %v513
        %519 = vst.msk [vmem:[#allocation2 + $0x8] sm:$0xff] %vm517, %v516
        %s520 = sld [smem:[#allocation3 + $0x2]]
        %v521 = vstv %s520
        %v522 = vmul.f32 %v386, %v521
        %v523 = vmul.f32 %v387, %v521
        %v524 = vmul.f32 %v388, %v521
        %v525 = vmul.f32 %v389, %v521
        %s526 = sld [smem:[#allocation3 + $0x82]]
        %v527 = vstv %s526
        %v528 = vmul.f32 %v390, %v527
        %v529 = vmul.f32 %v391, %v527
        %v530 = vmul.f32 %v392, %v527
        %v531 = vmul.f32 %v393, %v527
        %v532 = vadd.f32 %v522, %v528
        %v533 = vadd.f32 %v523, %v529
        %v534 = vadd.f32 %v524, %v530
        %v535 = vadd.f32 %v525, %v531
        %s536 = sld [smem:[#allocation3 + $0x102]]
        %v537 = vstv %s536
        %v538 = vmul.f32 %v394, %v537
        %v539 = vmul.f32 %v395, %v537
        %v540 = vmul.f32 %v396, %v537
        %v541 = vmul.f32 %v397, %v537
        %v542 = vadd.f32 %v532, %v538
        %v543 = vadd.f32 %v533, %v539
        %v544 = vadd.f32 %v534, %v540
        %v545 = vadd.f32 %v535, %v541
        %s546 = sld [smem:[#allocation3 + $0x182]]
        %v547 = vstv %s546
        %v548 = vmul.f32 %v398, %v547
        %v549 = vmul.f32 %v399, %v547
        %v550 = vmul.f32 %v400, %v547
        %v551 = vmul.f32 %v401, %v547
        %v552 = vadd.f32 %v542, %v548
        %v553 = vadd.f32 %v543, %v549
        %v554 = vadd.f32 %v544, %v550
        %v555 = vadd.f32 %v545, %v551
        %s556 = sld [smem:[#allocation6 + $0x2]]
        %v557 = vstv %s556
        %v558 = vadd.f32 %v552, %v557
        %v559 = vadd.f32 %v553, %v557
        %v560 = vadd.f32 %v554, %v557
        %v561 = vadd.f32 %v555, %v557
        %v562 = vmax.f32 %v558, 0.0
        %v563 = vmax.f32 %v559, 0.0
        %v564 = vmax.f32 %v560, 0.0
        %v565 = vmax.f32 %v561, 0.0
        %566 = vst [vmem:[%s369 + $0x20] sm:$0xff] %v562
        %567 = vst [vmem:[%s369 + $0x28] sm:$0xff] %v563
        %568 = vst [vmem:[%s369 + $0x120] sm:$0xff] %v564
        %569 = vst [vmem:[%s369 + $0x128] sm:$0xff] %v565
        %v570 = vadd.f32 %v562, %v563
        %571 = vadd.xlane.f32.xlu0 %v570
        %v572 = vpop.xlane.xlu0 %571
        %v573 = vadd.f32 %v564, %v565
        %574 = vadd.xlane.f32.xlu0 %v573
        %v575 = vpop.xlane.xlu0 %574
        %vm576 = vcmask 23568
        %577 = vst.msk [vmem:[#allocation2] sm:$0xff] %vm576, %v572
        %578 = vst.msk [vmem:[#allocation2 + $0x8] sm:$0xff] %vm576, %v575
        %s579 = sld [smem:[#allocation3 + $0x3]]
        %v580 = vstv %s579
        %v581 = vmul.f32 %v386, %v580
        %v582 = vmul.f32 %v387, %v580
        %v583 = vmul.f32 %v388, %v580
        %v584 = vmul.f32 %v389, %v580
        %s585 = sld [smem:[#allocation3 + $0x83]]
        %v586 = vstv %s585
        %v587 = vmul.f32 %v390, %v586
        %v588 = vmul.f32 %v391, %v586
        %v589 = vmul.f32 %v392, %v586
        %v590 = vmul.f32 %v393, %v586
        %v591 = vadd.f32 %v581, %v587
        %v592 = vadd.f32 %v582, %v588
        %v593 = vadd.f32 %v583, %v589
        %v594 = vadd.f32 %v584, %v590
        %s595 = sld [smem:[#allocation3 + $0x103]]
        %v596 = vstv %s595
        %v597 = vmul.f32 %v394, %v596
        %v598 = vmul.f32 %v395, %v596
        %v599 = vmul.f32 %v396, %v596
        %v600 = vmul.f32 %v397, %v596
        %v601 = vadd.f32 %v591, %v597
        %v602 = vadd.f32 %v592, %v598
        %v603 = vadd.f32 %v593, %v599
        %v604 = vadd.f32 %v594, %v600
        %s605 = sld [smem:[#allocation3 + $0x183]]
        %v606 = vstv %s605
        %v607 = vmul.f32 %v398, %v606
        %v608 = vmul.f32 %v399, %v606
        %v609 = vmul.f32 %v400, %v606
        %v610 = vmul.f32 %v401, %v606
        %v611 = vadd.f32 %v601, %v607
        %v612 = vadd.f32 %v602, %v608
        %v613 = vadd.f32 %v603, %v609
        %v614 = vadd.f32 %v604, %v610
        %s615 = sld [smem:[#allocation6 + $0x3]]
        %v616 = vstv %s615
        %v617 = vadd.f32 %v611, %v616
        %v618 = vadd.f32 %v612, %v616
        %v619 = vadd.f32 %v613, %v616
        %v620 = vadd.f32 %v614, %v616
        %v621 = vmax.f32 %v617, 0.0
        %v622 = vmax.f32 %v618, 0.0
        %v623 = vmax.f32 %v619, 0.0
        %v624 = vmax.f32 %v620, 0.0
        %625 = vst [vmem:[%s369 + $0x30] sm:$0xff] %v621
        %626 = vst [vmem:[%s369 + $0x38] sm:$0xff] %v622
        %627 = vst [vmem:[%s369 + $0x130] sm:$0xff] %v623
        %628 = vst [vmem:[%s369 + $0x138] sm:$0xff] %v624
        %v629 = vadd.f32 %v621, %v622
        %630 = vadd.xlane.f32.xlu0 %v629
        %v631 = vpop.xlane.xlu0 %630
        %v632 = vadd.f32 %v623, %v624
        %633 = vadd.xlane.f32.xlu0 %v632
        %v634 = vpop.xlane.xlu0 %633
        %vm635 = vcmask 31768
        %636 = vst.msk [vmem:[#allocation2] sm:$0xff] %vm635, %v631
        %637 = vst.msk [vmem:[#allocation2 + $0x8] sm:$0xff] %vm635, %v634
        %s638 = sld [smem:[#allocation3 + $0x4]]
        %v639 = vstv %s638
        %v640 = vmul.f32 %v386, %v639
        %v641 = vmul.f32 %v387, %v639
        %v642 = vmul.f32 %v388, %v639
        %v643 = vmul.f32 %v389, %v639
        %s644 = sld [smem:[#allocation3 + $0x84]]
        %v645 = vstv %s644
        %v646 = vmul.f32 %v390, %v645
        %v647 = vmul.f32 %v391, %v645
        %v648 = vmul.f32 %v392, %v645
        %v649 = vmul.f32 %v393, %v645
        %v650 = vadd.f32 %v640, %v646
        %v651 = vadd.f32 %v641, %v647
        %v652 = vadd.f32 %v642, %v648
        %v653 = vadd.f32 %v643, %v649
        %s654 = sld [smem:[#allocation3 + $0x104]]
        %v655 = vstv %s654
        %v656 = vmul.f32 %v394, %v655
        %v657 = vmul.f32 %v395, %v655
        %v658 = vmul.f32 %v396, %v655
        %v659 = vmul.f32 %v397, %v655
        %v660 = vadd.f32 %v650, %v656
        %v661 = vadd.f32 %v651, %v657
        %v662 = vadd.f32 %v652, %v658
        %v663 = vadd.f32 %v653, %v659
        %s664 = sld [smem:[#allocation3 + $0x184]]
        %v665 = vstv %s664
        %v666 = vmul.f32 %v398, %v665
        %v667 = vmul.f32 %v399, %v665
        %v668 = vmul.f32 %v400, %v665
        %v669 = vmul.f32 %v401, %v665
        %v670 = vadd.f32 %v660, %v666
        %v671 = vadd.f32 %v661, %v667
        %v672 = vadd.f32 %v662, %v668
        %v673 = vadd.f32 %v663, %v669
        %s674 = sld [smem:[#allocation6 + $0x4]]
        %v675 = vstv %s674
        %v676 = vadd.f32 %v670, %v675
        %v677 = vadd.f32 %v671, %v675
        %v678 = vadd.f32 %v672, %v675
        %v679 = vadd.f32 %v673, %v675
        %v680 = vmax.f32 %v676, 0.0
        %v681 = vmax.f32 %v677, 0.0
        %v682 = vmax.f32 %v678, 0.0
        %v683 = vmax.f32 %v679, 0.0
        %684 = vst [vmem:[%s369 + $0x40] sm:$0xff] %v680
        %685 = vst [vmem:[%s369 + $0x48] sm:$0xff] %v681
        %686 = vst [vmem:[%s369 + $0x140] sm:$0xff] %v682
        %687 = vst [vmem:[%s369 + $0x148] sm:$0xff] %v683
        %v688 = vadd.f32 %v680, %v681
        %689 = vadd.xlane.f32.xlu0 %v688
        %v690 = vpop.xlane.xlu0 %689
        %v691 = vadd.f32 %v682, %v683
        %692 = vadd.xlane.f32.xlu0 %v691
        %v693 = vpop.xlane.xlu0 %692
        %vm694 = vcmask 39968
        %695 = vst.msk [vmem:[#allocation2] sm:$0xff] %vm694, %v690
        %696 = vst.msk [vmem:[#allocation2 + $0x8] sm:$0xff] %vm694, %v693
        %s697 = sld [smem:[#allocation3 + $0x5]]
        %v698 = vstv %s697
        %v699 = vmul.f32 %v386, %v698
        %v700 = vmul.f32 %v387, %v698
        %v701 = vmul.f32 %v388, %v698
        %v702 = vmul.f32 %v389, %v698
        %s703 = sld [smem:[#allocation3 + $0x85]]
        %v704 = vstv %s703
        %v705 = vmul.f32 %v390, %v704
        %v706 = vmul.f32 %v391, %v704
        %v707 = vmul.f32 %v392, %v704
        %v708 = vmul.f32 %v393, %v704
        %v709 = vadd.f32 %v699, %v705
        %v710 = vadd.f32 %v700, %v706
        %v711 = vadd.f32 %v701, %v707
        %v712 = vadd.f32 %v702, %v708
        %s713 = sld [smem:[#allocation3 + $0x105]]
        %v714 = vstv %s713
        %v715 = vmul.f32 %v394, %v714
        %v716 = vmul.f32 %v395, %v714
        %v717 = vmul.f32 %v396, %v714
        %v718 = vmul.f32 %v397, %v714
        %v719 = vadd.f32 %v709, %v715
        %v720 = vadd.f32 %v710, %v716
        %v721 = vadd.f32 %v711, %v717
        %v722 = vadd.f32 %v712, %v718
        %s723 = sld [smem:[#allocation3 + $0x185]]
        %v724 = vstv %s723
        %v725 = vmul.f32 %v398, %v724
        %v726 = vmul.f32 %v399, %v724
        %v727 = vmul.f32 %v400, %v724
        %v728 = vmul.f32 %v401, %v724
        %v729 = vadd.f32 %v719, %v725
        %v730 = vadd.f32 %v720, %v726
        %v731 = vadd.f32 %v721, %v727
        %v732 = vadd.f32 %v722, %v728
        %s733 = sld [smem:[#allocation6 + $0x5]]
        %v734 = vstv %s733
        %v735 = vadd.f32 %v729, %v734
        %v736 = vadd.f32 %v730, %v734
        %v737 = vadd.f32 %v731, %v734
        %v738 = vadd.f32 %v732, %v734
        %v739 = vmax.f32 %v735, 0.0
        %v740 = vmax.f32 %v736, 0.0
        %v741 = vmax.f32 %v737, 0.0
        %v742 = vmax.f32 %v738, 0.0
        %743 = vst [vmem:[%s369 + $0x50] sm:$0xff] %v739
        %744 = vst [vmem:[%s369 + $0x58] sm:$0xff] %v740
        %745 = vst [vmem:[%s369 + $0x150] sm:$0xff] %v741
        %746 = vst [vmem:[%s369 + $0x158] sm:$0xff] %v742
        %v747 = vadd.f32 %v739, %v740
        %748 = vadd.xlane.f32.xlu0 %v747
        %v749 = vpop.xlane.xlu0 %748
        %v750 = vadd.f32 %v741, %v742
        %751 = vadd.xlane.f32.xlu0 %v750
        %v752 = vpop.xlane.xlu0 %751
        %vm753 = vcmask 48168
        %754 = vst.msk [vmem:[#allocation2] sm:$0xff] %vm753, %v749
        %755 = vst.msk [vmem:[#allocation2 + $0x8] sm:$0xff] %vm753, %v752
        %s756 = sld [smem:[#allocation3 + $0x6]]
        %v757 = vstv %s756
        %v758 = vmul.f32 %v386, %v757
        %v759 = vmul.f32 %v387, %v757
        %v760 = vmul.f32 %v388, %v757
        %v761 = vmul.f32 %v389, %v757
        %s762 = sld [smem:[#allocation3 + $0x86]]
        %v763 = vstv %s762
        %v764 = vmul.f32 %v390, %v763
        %v765 = vmul.f32 %v391, %v763
        %v766 = vmul.f32 %v392, %v763
        %v767 = vmul.f32 %v393, %v763
        %v768 = vadd.f32 %v758, %v764
        %v769 = vadd.f32 %v759, %v765
        %v770 = vadd.f32 %v760, %v766
        %v771 = vadd.f32 %v761, %v767
        %s772 = sld [smem:[#allocation3 + $0x106]]
        %v773 = vstv %s772
        %v774 = vmul.f32 %v394, %v773
        %v775 = vmul.f32 %v395, %v773
        %v776 = vmul.f32 %v396, %v773
        %v777 = vmul.f32 %v397, %v773
        %v778 = vadd.f32 %v768, %v774
        %v779 = vadd.f32 %v769, %v775
        %v780 = vadd.f32 %v770, %v776
        %v781 = vadd.f32 %v771, %v777
        %s782 = sld [smem:[#allocation3 + $0x186]]
        %v783 = vstv %s782
        %v784 = vmul.f32 %v398, %v783
        %v785 = vmul.f32 %v399, %v783
        %v786 = vmul.f32 %v400, %v783
        %v787 = vmul.f32 %v401, %v783
        %v788 = vadd.f32 %v778, %v784
        %v789 = vadd.f32 %v779, %v785
        %v790 = vadd.f32 %v780, %v786
        %v791 = vadd.f32 %v781, %v787
        %s792 = sld [smem:[#allocation6 + $0x6]]
        %v793 = vstv %s792
        %v794 = vadd.f32 %v788, %v793
        %v795 = vadd.f32 %v789, %v793
        %v796 = vadd.f32 %v790, %v793
        %v797 = vadd.f32 %v791, %v793
        %v798 = vmax.f32 %v794, 0.0
        %v799 = vmax.f32 %v795, 0.0
        %v800 = vmax.f32 %v796, 0.0
        %v801 = vmax.f32 %v797, 0.0
        %802 = vst [vmem:[%s369 + $0x60] sm:$0xff] %v798
        %803 = vst [vmem:[%s369 + $0x68] sm:$0xff] %v799
        %804 = vst [vmem:[%s369 + $0x160] sm:$0xff] %v800
        %805 = vst [vmem:[%s369 + $0x168] sm:$0xff] %v801
        %v806 = vadd.f32 %v798, %v799
        %807 = vadd.xlane.f32.xlu0 %v806
        %v808 = vpop.xlane.xlu0 %807
        %v809 = vadd.f32 %v800, %v801
        %810 = vadd.xlane.f32.xlu0 %v809
        %v811 = vpop.xlane.xlu0 %810
        %vm812 = vcmask 56368
        %813 = vst.msk [vmem:[#allocation2] sm:$0xff] %vm812, %v808
        %814 = vst.msk [vmem:[#allocation2 + $0x8] sm:$0xff] %vm812, %v811
        %s815 = sld [smem:[#allocation3 + $0x7]]
        %v816 = vstv %s815
        %v817 = vmul.f32 %v386, %v816
        %v818 = vmul.f32 %v387, %v816
        %v819 = vmul.f32 %v388, %v816
        %v820 = vmul.f32 %v389, %v816
        %s821 = sld [smem:[#allocation3 + $0x87]]
        %v822 = vstv %s821
        %v823 = vmul.f32 %v390, %v822
        %v824 = vmul.f32 %v391, %v822
        %v825 = vmul.f32 %v392, %v822
        %v826 = vmul.f32 %v393, %v822
        %v827 = vadd.f32 %v817, %v823
        %v828 = vadd.f32 %v818, %v824
        %v829 = vadd.f32 %v819, %v825
        %v830 = vadd.f32 %v820, %v826
        %s831 = sld [smem:[#allocation3 + $0x107]]
        %v832 = vstv %s831
        %v833 = vmul.f32 %v394, %v832
        %v834 = vmul.f32 %v395, %v832
        %v835 = vmul.f32 %v396, %v832
        %v836 = vmul.f32 %v397, %v832
        %v837 = vadd.f32 %v827, %v833
        %v838 = vadd.f32 %v828, %v834
        %v839 = vadd.f32 %v829, %v835
        %v840 = vadd.f32 %v830, %v836
        %s841 = sld [smem:[#allocation3 + $0x187]]
        %v842 = vstv %s841
        %v843 = vmul.f32 %v398, %v842
        %v844 = vmul.f32 %v399, %v842
        %v845 = vmul.f32 %v400, %v842
        %v846 = vmul.f32 %v401, %v842
        %v847 = vadd.f32 %v837, %v843
        %v848 = vadd.f32 %v838, %v844
        %v849 = vadd.f32 %v839, %v845
        %v850 = vadd.f32 %v840, %v846
        %s851 = sld [smem:[#allocation6 + $0x7]]
        %v852 = vstv %s851
        %v853 = vadd.f32 %v847, %v852
        %v854 = vadd.f32 %v848, %v852
        %v855 = vadd.f32 %v849, %v852
        %v856 = vadd.f32 %v850, %v852
        %v857 = vmax.f32 %v853, 0.0
        %v858 = vmax.f32 %v854, 0.0
        %v859 = vmax.f32 %v855, 0.0
        %v860 = vmax.f32 %v856, 0.0
        %861 = vst [vmem:[%s369 + $0x70] sm:$0xff] %v857
        %862 = vst [vmem:[%s369 + $0x78] sm:$0xff] %v858
        %863 = vst [vmem:[%s369 + $0x170] sm:$0xff] %v859
        %864 = vst [vmem:[%s369 + $0x178] sm:$0xff] %v860
        %v865 = vadd.f32 %v857, %v858
        %866 = vadd.xlane.f32.xlu0 %v865
        %v867 = vpop.xlane.xlu0 %866
        %v868 = vadd.f32 %v859, %v860
        %869 = vadd.xlane.f32.xlu0 %v868
        %v870 = vpop.xlane.xlu0 %869
        %vm871 = vcmask 64568
        %872 = vst.msk [vmem:[#allocation2] sm:$0xff] %vm871, %v867
        %873 = vst.msk [vmem:[#allocation2 + $0x8] sm:$0xff] %vm871, %v870
        %s874 = sld [smem:[#allocation3 + $0x8]]
        %v875 = vstv %s874
        %v876 = vmul.f32 %v386, %v875
        %v877 = vmul.f32 %v387, %v875
        %v878 = vmul.f32 %v388, %v875
        %v879 = vmul.f32 %v389, %v875
        %s880 = sld [smem:[#allocation3 + $0x88]]
        %v881 = vstv %s880
        %v882 = vmul.f32 %v390, %v881
        %v883 = vmul.f32 %v391, %v881
        %v884 = vmul.f32 %v392, %v881
        %v885 = vmul.f32 %v393, %v881
        %v886 = vadd.f32 %v876, %v882
        %v887 = vadd.f32 %v877, %v883
        %v888 = vadd.f32 %v878, %v884
        %v889 = vadd.f32 %v879, %v885
        %s890 = sld [smem:[#allocation3 + $0x108]]
        %v891 = vstv %s890
        %v892 = vmul.f32 %v394, %v891
        %v893 = vmul.f32 %v395, %v891
        %v894 = vmul.f32 %v396, %v891
        %v895 = vmul.f32 %v397, %v891
        %v896 = vadd.f32 %v886, %v892
        %v897 = vadd.f32 %v887, %v893
        %v898 = vadd.f32 %v888, %v894
        %v899 = vadd.f32 %v889, %v895
        %s900 = sld [smem:[#allocation3 + $0x188]]
        %v901 = vstv %s900
        %v902 = vmul.f32 %v398, %v901
        %v903 = vmul.f32 %v399, %v901
        %v904 = vmul.f32 %v400, %v901
        %v905 = vmul.f32 %v401, %v901
        %v906 = vadd.f32 %v896, %v902
        %v907 = vadd.f32 %v897, %v903
        %v908 = vadd.f32 %v898, %v904
        %v909 = vadd.f32 %v899, %v905
        %s910 = sld [smem:[#allocation6 + $0x8]]
        %v911 = vstv %s910
        %v912 = vadd.f32 %v906, %v911
        %v913 = vadd.f32 %v907, %v911
        %v914 = vadd.f32 %v908, %v911
        %v915 = vadd.f32 %v909, %v911
        %v916 = vmax.f32 %v912, 0.0
        %v917 = vmax.f32 %v913, 0.0
        %v918 = vmax.f32 %v914, 0.0
        %v919 = vmax.f32 %v915, 0.0
        %920 = vst [vmem:[%s369 + $0x80] sm:$0xff] %v916
        %921 = vst [vmem:[%s369 + $0x88] sm:$0xff] %v917
        %922 = vst [vmem:[%s369 + $0x180] sm:$0xff] %v918
        %923 = vst [vmem:[%s369 + $0x188] sm:$0xff] %v919
        %v924 = vadd.f32 %v916, %v917
        %925 = vadd.xlane.f32.xlu0 %v924
        %v926 = vpop.xlane.xlu0 %925
        %v927 = vadd.f32 %v918, %v919
        %928 = vadd.xlane.f32.xlu0 %v927
        %v929 = vpop.xlane.xlu0 %928
        %vm930 = vcmask 72768
        %931 = vst.msk [vmem:[#allocation2] sm:$0xff] %vm930, %v926
        %932 = vst.msk [vmem:[#allocation2 + $0x8] sm:$0xff] %vm930, %v929
        %s933 = sld [smem:[#allocation3 + $0x9]]
        %v934 = vstv %s933
        %v935 = vmul.f32 %v386, %v934
        %v936 = vmul.f32 %v387, %v934
        %v937 = vmul.f32 %v388, %v934
        %v938 = vmul.f32 %v389, %v934
        %s939 = sld [smem:[#allocation3 + $0x89]]
        %v940 = vstv %s939
        %v941 = vmul.f32 %v390, %v940
        %v942 = vmul.f32 %v391, %v940
        %v943 = vmul.f32 %v392, %v940
        %v944 = vmul.f32 %v393, %v940
        %v945 = vadd.f32 %v935, %v941
        %v946 = vadd.f32 %v936, %v942
        %v947 = vadd.f32 %v937, %v943
        %v948 = vadd.f32 %v938, %v944
        %s949 = sld [smem:[#allocation3 + $0x109]]
        %v950 = vstv %s949
        %v951 = vmul.f32 %v394, %v950
        %v952 = vmul.f32 %v395, %v950
        %v953 = vmul.f32 %v396, %v950
        %v954 = vmul.f32 %v397, %v950
        %v955 = vadd.f32 %v945, %v951
        %v956 = vadd.f32 %v946, %v952
        %v957 = vadd.f32 %v947, %v953
        %v958 = vadd.f32 %v948, %v954
        %s959 = sld [smem:[#allocation3 + $0x189]]
        %v960 = vstv %s959
        %v961 = vmul.f32 %v398, %v960
        %v962 = vmul.f32 %v399, %v960
        %v963 = vmul.f32 %v400, %v960
        %v964 = vmul.f32 %v401, %v960
        %v965 = vadd.f32 %v955, %v961
        %v966 = vadd.f32 %v956, %v962
        %v967 = vadd.f32 %v957, %v963
        %v968 = vadd.f32 %v958, %v964
        %s969 = sld [smem:[#allocation6 + $0x9]]
        %v970 = vstv %s969
        %v971 = vadd.f32 %v965, %v970
        %v972 = vadd.f32 %v966, %v970
        %v973 = vadd.f32 %v967, %v970
        %v974 = vadd.f32 %v968, %v970
        %v975 = vmax.f32 %v971, 0.0
        %v976 = vmax.f32 %v972, 0.0
        %v977 = vmax.f32 %v973, 0.0
        %v978 = vmax.f32 %v974, 0.0
        %979 = vst [vmem:[%s369 + $0x90] sm:$0xff] %v975
        %980 = vst [vmem:[%s369 + $0x98] sm:$0xff] %v976
        %981 = vst [vmem:[%s369 + $0x190] sm:$0xff] %v977
        %982 = vst [vmem:[%s369 + $0x198] sm:$0xff] %v978
        %v983 = vadd.f32 %v975, %v976
        %984 = vadd.xlane.f32.xlu0 %v983
        %v985 = vpop.xlane.xlu0 %984
        %v986 = vadd.f32 %v977, %v978
        %987 = vadd.xlane.f32.xlu0 %v986
        %v988 = vpop.xlane.xlu0 %987
        %vm989 = vcmask 80968
        %990 = vst.msk [vmem:[#allocation2] sm:$0xff] %vm989, %v985
        %991 = vst.msk [vmem:[#allocation2 + $0x8] sm:$0xff] %vm989, %v988
        %s992 = sld [smem:[#allocation3 + $0xa]]
        %v993 = vstv %s992
        %v994 = vmul.f32 %v386, %v993
        %v995 = vmul.f32 %v387, %v993
        %v996 = vmul.f32 %v388, %v993
        %v997 = vmul.f32 %v389, %v993
        %s998 = sld [smem:[#allocation3 + $0x8a]]
        %v999 = vstv %s998
        %v1000 = vmul.f32 %v390, %v999
        %v1001 = vmul.f32 %v391, %v999
        %v1002 = vmul.f32 %v392, %v999
        %v1003 = vmul.f32 %v393, %v999
        %v1004 = vadd.f32 %v994, %v1000
        %v1005 = vadd.f32 %v995, %v1001
        %v1006 = vadd.f32 %v996, %v1002
        %v1007 = vadd.f32 %v997, %v1003
        %s1008 = sld [smem:[#allocation3 + $0x10a]]
        %v1009 = vstv %s1008
        %v1010 = vmul.f32 %v394, %v1009
        %v1011 = vmul.f32 %v395, %v1009
        %v1012 = vmul.f32 %v396, %v1009
        %v1013 = vmul.f32 %v397, %v1009
        %v1014 = vadd.f32 %v1004, %v1010
        %v1015 = vadd.f32 %v1005, %v1011
        %v1016 = vadd.f32 %v1006, %v1012
        %v1017 = vadd.f32 %v1007, %v1013
        %s1018 = sld [smem:[#allocation3 + $0x18a]]
        %v1019 = vstv %s1018
        %v1020 = vmul.f32 %v398, %v1019
        %v1021 = vmul.f32 %v399, %v1019
        %v1022 = vmul.f32 %v400, %v1019
        %v1023 = vmul.f32 %v401, %v1019
        %v1024 = vadd.f32 %v1014, %v1020
        %v1025 = vadd.f32 %v1015, %v1021
        %v1026 = vadd.f32 %v1016, %v1022
        %v1027 = vadd.f32 %v1017, %v1023
        %s1028 = sld [smem:[#allocation6 + $0xa]]
        %v1029 = vstv %s1028
        %v1030 = vadd.f32 %v1024, %v1029
        %v1031 = vadd.f32 %v1025, %v1029
        %v1032 = vadd.f32 %v1026, %v1029
        %v1033 = vadd.f32 %v1027, %v1029
        %v1034 = vmax.f32 %v1030, 0.0
        %v1035 = vmax.f32 %v1031, 0.0
        %v1036 = vmax.f32 %v1032, 0.0
        %v1037 = vmax.f32 %v1033, 0.0
        %1038 = vst [vmem:[%s369 + $0xa0] sm:$0xff] %v1034
        %1039 = vst [vmem:[%s369 + $0xa8] sm:$0xff] %v1035
        %1040 = vst [vmem:[%s369 + $0x1a0] sm:$0xff] %v1036
        %1041 = vst [vmem:[%s369 + $0x1a8] sm:$0xff] %v1037
        %v1042 = vadd.f32 %v1034, %v1035
        %1043 = vadd.xlane.f32.xlu0 %v1042
        %v1044 = vpop.xlane.xlu0 %1043
        %v1045 = vadd.f32 %v1036, %v1037
        %1046 = vadd.xlane.f32.xlu0 %v1045
        %v1047 = vpop.xlane.xlu0 %1046
        %vm1048 = vcmask 89168
        %1049 = vst.msk [vmem:[#allocation2] sm:$0xff] %vm1048, %v1044
        %1050 = vst.msk [vmem:[#allocation2 + $0x8] sm:$0xff] %vm1048, %v1047
        %s1051 = sld [smem:[#allocation3 + $0xb]]
        %v1052 = vstv %s1051
        %v1053 = vmul.f32 %v386, %v1052
        %v1054 = vmul.f32 %v387, %v1052
        %v1055 = vmul.f32 %v388, %v1052
        %v1056 = vmul.f32 %v389, %v1052
        %s1057 = sld [smem:[#allocation3 + $0x8b]]
        %v1058 = vstv %s1057
        %v1059 = vmul.f32 %v390, %v1058
        %v1060 = vmul.f32 %v391, %v1058
        %v1061 = vmul.f32 %v392, %v1058
        %v1062 = vmul.f32 %v393, %v1058
        %v1063 = vadd.f32 %v1053, %v1059
        %v1064 = vadd.f32 %v1054, %v1060
        %v1065 = vadd.f32 %v1055, %v1061
        %v1066 = vadd.f32 %v1056, %v1062
        %s1067 = sld [smem:[#allocation3 + $0x10b]]
        %v1068 = vstv %s1067
        %v1069 = vmul.f32 %v394, %v1068
        %v1070 = vmul.f32 %v395, %v1068
        %v1071 = vmul.f32 %v396, %v1068
        %v1072 = vmul.f32 %v397, %v1068
        %v1073 = vadd.f32 %v1063, %v1069
        %v1074 = vadd.f32 %v1064, %v1070
        %v1075 = vadd.f32 %v1065, %v1071
        %v1076 = vadd.f32 %v1066, %v1072
        %s1077 = sld [smem:[#allocation3 + $0x18b]]
        %v1078 = vstv %s1077
        %v1079 = vmul.f32 %v398, %v1078
        %v1080 = vmul.f32 %v399, %v1078
        %v1081 = vmul.f32 %v400, %v1078
        %v1082 = vmul.f32 %v401, %v1078
        %v1083 = vadd.f32 %v1073, %v1079
        %v1084 = vadd.f32 %v1074, %v1080
        %v1085 = vadd.f32 %v1075, %v1081
        %v1086 = vadd.f32 %v1076, %v1082
        %s1087 = sld [smem:[#allocation6 + $0xb]]
        %v1088 = vstv %s1087
        %v1089 = vadd.f32 %v1083, %v1088
        %v1090 = vadd.f32 %v1084, %v1088
        %v1091 = vadd.f32 %v1085, %v1088
        %v1092 = vadd.f32 %v1086, %v1088
        %v1093 = vmax.f32 %v1089, 0.0
        %v1094 = vmax.f32 %v1090, 0.0
        %v1095 = vmax.f32 %v1091, 0.0
        %v1096 = vmax.f32 %v1092, 0.0
        %1097 = vst [vmem:[%s369 + $0xb0] sm:$0xff] %v1093
        %1098 = vst [vmem:[%s369 + $0xb8] sm:$0xff] %v1094
        %1099 = vst [vmem:[%s369 + $0x1b0] sm:$0xff] %v1095
        %1100 = vst [vmem:[%s369 + $0x1b8] sm:$0xff] %v1096
        %v1101 = vadd.f32 %v1093, %v1094
        %1102 = vadd.xlane.f32.xlu0 %v1101
        %v1103 = vpop.xlane.xlu0 %1102
        %v1104 = vadd.f32 %v1095, %v1096
        %1105 = vadd.xlane.f32.xlu0 %v1104
        %v1106 = vpop.xlane.xlu0 %1105
        %vm1107 = vcmask 97368
        %1108 = vst.msk [vmem:[#allocation2] sm:$0xff] %vm1107, %v1103
        %1109 = vst.msk [vmem:[#allocation2 + $0x8] sm:$0xff] %vm1107, %v1106
        %s1110 = sld [smem:[#allocation3 + $0xc]]
        %v1111 = vstv %s1110
        %v1112 = vmul.f32 %v386, %v1111
        %v1113 = vmul.f32 %v387, %v1111
        %v1114 = vmul.f32 %v388, %v1111
        %v1115 = vmul.f32 %v389, %v1111
        %s1116 = sld [smem:[#allocation3 + $0x8c]]
        %v1117 = vstv %s1116
        %v1118 = vmul.f32 %v390, %v1117
        %v1119 = vmul.f32 %v391, %v1117
        %v1120 = vmul.f32 %v392, %v1117
        %v1121 = vmul.f32 %v393, %v1117
        %v1122 = vadd.f32 %v1112, %v1118
        %v1123 = vadd.f32 %v1113, %v1119
        %v1124 = vadd.f32 %v1114, %v1120
        %v1125 = vadd.f32 %v1115, %v1121
        %s1126 = sld [smem:[#allocation3 + $0x10c]]
        %v1127 = vstv %s1126
        %v1128 = vmul.f32 %v394, %v1127
        %v1129 = vmul.f32 %v395, %v1127
        %v1130 = vmul.f32 %v396, %v1127
        %v1131 = vmul.f32 %v397, %v1127
        %v1132 = vadd.f32 %v1122, %v1128
        %v1133 = vadd.f32 %v1123, %v1129
        %v1134 = vadd.f32 %v1124, %v1130
        %v1135 = vadd.f32 %v1125, %v1131
        %s1136 = sld [smem:[#allocation3 + $0x18c]]
        %v1137 = vstv %s1136
        %v1138 = vmul.f32 %v398, %v1137
        %v1139 = vmul.f32 %v399, %v1137
        %v1140 = vmul.f32 %v400, %v1137
        %v1141 = vmul.f32 %v401, %v1137
        %v1142 = vadd.f32 %v1132, %v1138
        %v1143 = vadd.f32 %v1133, %v1139
        %v1144 = vadd.f32 %v1134, %v1140
        %v1145 = vadd.f32 %v1135, %v1141
        %s1146 = sld [smem:[#allocation6 + $0xc]]
        %v1147 = vstv %s1146
        %v1148 = vadd.f32 %v1142, %v1147
        %v1149 = vadd.f32 %v1143, %v1147
        %v1150 = vadd.f32 %v1144, %v1147
        %v1151 = vadd.f32 %v1145, %v1147
        %v1152 = vmax.f32 %v1148, 0.0
        %v1153 = vmax.f32 %v1149, 0.0
        %v1154 = vmax.f32 %v1150, 0.0
        %v1155 = vmax.f32 %v1151, 0.0
        %1156 = vst [vmem:[%s369 + $0xc0] sm:$0xff] %v1152
        %1157 = vst [vmem:[%s369 + $0xc8] sm:$0xff] %v1153
        %1158 = vst [vmem:[%s369 + $0x1c0] sm:$0xff] %v1154
        %1159 = vst [vmem:[%s369 + $0x1c8] sm:$0xff] %v1155
        %v1160 = vadd.f32 %v1152, %v1153
        %1161 = vadd.xlane.f32.xlu0 %v1160
        %v1162 = vpop.xlane.xlu0 %1161
        %v1163 = vadd.f32 %v1154, %v1155
        %1164 = vadd.xlane.f32.xlu0 %v1163
        %v1165 = vpop.xlane.xlu0 %1164
        %vm1166 = vcmask 105568
        %1167 = vst.msk [vmem:[#allocation2] sm:$0xff] %vm1166, %v1162
        %1168 = vst.msk [vmem:[#allocation2 + $0x8] sm:$0xff] %vm1166, %v1165
        %s1169 = sld [smem:[#allocation3 + $0xd]]
        %v1170 = vstv %s1169
        %v1171 = vmul.f32 %v386, %v1170
        %v1172 = vmul.f32 %v387, %v1170
        %v1173 = vmul.f32 %v388, %v1170
        %v1174 = vmul.f32 %v389, %v1170
        %s1175 = sld [smem:[#allocation3 + $0x8d]]
        %v1176 = vstv %s1175
        %v1177 = vmul.f32 %v390, %v1176
        %v1178 = vmul.f32 %v391, %v1176
        %v1179 = vmul.f32 %v392, %v1176
        %v1180 = vmul.f32 %v393, %v1176
        %v1181 = vadd.f32 %v1171, %v1177
        %v1182 = vadd.f32 %v1172, %v1178
        %v1183 = vadd.f32 %v1173, %v1179
        %v1184 = vadd.f32 %v1174, %v1180
        %s1185 = sld [smem:[#allocation3 + $0x10d]]
        %v1186 = vstv %s1185
        %v1187 = vmul.f32 %v394, %v1186
        %v1188 = vmul.f32 %v395, %v1186
        %v1189 = vmul.f32 %v396, %v1186
        %v1190 = vmul.f32 %v397, %v1186
        %v1191 = vadd.f32 %v1181, %v1187
        %v1192 = vadd.f32 %v1182, %v1188
        %v1193 = vadd.f32 %v1183, %v1189
        %v1194 = vadd.f32 %v1184, %v1190
        %s1195 = sld [smem:[#allocation3 + $0x18d]]
        %v1196 = vstv %s1195
        %v1197 = vmul.f32 %v398, %v1196
        %v1198 = vmul.f32 %v399, %v1196
        %v1199 = vmul.f32 %v400, %v1196
        %v1200 = vmul.f32 %v401, %v1196
        %v1201 = vadd.f32 %v1191, %v1197
        %v1202 = vadd.f32 %v1192, %v1198
        %v1203 = vadd.f32 %v1193, %v1199
        %v1204 = vadd.f32 %v1194, %v1200
        %s1205 = sld [smem:[#allocation6 + $0xd]]
        %v1206 = vstv %s1205
        %v1207 = vadd.f32 %v1201, %v1206
        %v1208 = vadd.f32 %v1202, %v1206
        %v1209 = vadd.f32 %v1203, %v1206
        %v1210 = vadd.f32 %v1204, %v1206
        %v1211 = vmax.f32 %v1207, 0.0
        %v1212 = vmax.f32 %v1208, 0.0
        %v1213 = vmax.f32 %v1209, 0.0
        %v1214 = vmax.f32 %v1210, 0.0
        %1215 = vst [vmem:[%s369 + $0xd0] sm:$0xff] %v1211
        %1216 = vst [vmem:[%s369 + $0xd8] sm:$0xff] %v1212
        %1217 = vst [vmem:[%s369 + $0x1d0] sm:$0xff] %v1213
        %1218 = vst [vmem:[%s369 + $0x1d8] sm:$0xff] %v1214
        %v1219 = vadd.f32 %v1211, %v1212
        %1220 = vadd.xlane.f32.xlu0 %v1219
        %v1221 = vpop.xlane.xlu0 %1220
        %v1222 = vadd.f32 %v1213, %v1214
        %1223 = vadd.xlane.f32.xlu0 %v1222
        %v1224 = vpop.xlane.xlu0 %1223
        %vm1225 = vcmask 113768
        %1226 = vst.msk [vmem:[#allocation2] sm:$0xff] %vm1225, %v1221
        %1227 = vst.msk [vmem:[#allocation2 + $0x8] sm:$0xff] %vm1225, %v1224
        %s1228 = sld [smem:[#allocation3 + $0xe]]
        %v1229 = vstv %s1228
        %v1230 = vmul.f32 %v386, %v1229
        %v1231 = vmul.f32 %v387, %v1229
        %v1232 = vmul.f32 %v388, %v1229
        %v1233 = vmul.f32 %v389, %v1229
        %s1234 = sld [smem:[#allocation3 + $0x8e]]
        %v1235 = vstv %s1234
        %v1236 = vmul.f32 %v390, %v1235
        %v1237 = vmul.f32 %v391, %v1235
        %v1238 = vmul.f32 %v392, %v1235
        %v1239 = vmul.f32 %v393, %v1235
        %v1240 = vadd.f32 %v1230, %v1236
        %v1241 = vadd.f32 %v1231, %v1237
        %v1242 = vadd.f32 %v1232, %v1238
        %v1243 = vadd.f32 %v1233, %v1239
        %s1244 = sld [smem:[#allocation3 + $0x10e]]
        %v1245 = vstv %s1244
        %v1246 = vmul.f32 %v394, %v1245
        %v1247 = vmul.f32 %v395, %v1245
        %v1248 = vmul.f32 %v396, %v1245
        %v1249 = vmul.f32 %v397, %v1245
        %v1250 = vadd.f32 %v1240, %v1246
        %v1251 = vadd.f32 %v1241, %v1247
        %v1252 = vadd.f32 %v1242, %v1248
        %v1253 = vadd.f32 %v1243, %v1249
        %s1254 = sld [smem:[#allocation3 + $0x18e]]
        %v1255 = vstv %s1254
        %v1256 = vmul.f32 %v398, %v1255
        %v1257 = vmul.f32 %v399, %v1255
        %v1258 = vmul.f32 %v400, %v1255
        %v1259 = vmul.f32 %v401, %v1255
        %v1260 = vadd.f32 %v1250, %v1256
        %v1261 = vadd.f32 %v1251, %v1257
        %v1262 = vadd.f32 %v1252, %v1258
        %v1263 = vadd.f32 %v1253, %v1259
        %s1264 = sld [smem:[#allocation6 + $0xe]]
        %v1265 = vstv %s1264
        %v1266 = vadd.f32 %v1260, %v1265
        %v1267 = vadd.f32 %v1261, %v1265
        %v1268 = vadd.f32 %v1262, %v1265
        %v1269 = vadd.f32 %v1263, %v1265
        %v1270 = vmax.f32 %v1266, 0.0
        %v1271 = vmax.f32 %v1267, 0.0
        %v1272 = vmax.f32 %v1268, 0.0
        %v1273 = vmax.f32 %v1269, 0.0
        %1274 = vst [vmem:[%s369 + $0xe0] sm:$0xff] %v1270
        %1275 = vst [vmem:[%s369 + $0xe8] sm:$0xff] %v1271
        %1276 = vst [vmem:[%s369 + $0x1e0] sm:$0xff] %v1272
        %1277 = vst [vmem:[%s369 + $0x1e8] sm:$0xff] %v1273
        %v1278 = vadd.f32 %v1270, %v1271
        %1279 = vadd.xlane.f32.xlu0 %v1278
        %v1280 = vpop.xlane.xlu0 %1279
        %v1281 = vadd.f32 %v1272, %v1273
        %1282 = vadd.xlane.f32.xlu0 %v1281
        %v1283 = vpop.xlane.xlu0 %1282
        %vm1284 = vcmask 121968
        %1285 = vst.msk [vmem:[#allocation2] sm:$0xff] %vm1284, %v1280
        %1286 = vst.msk [vmem:[#allocation2 + $0x8] sm:$0xff] %vm1284, %v1283
        %s1287 = sld [smem:[#allocation3 + $0xf]]
        %v1288 = vstv %s1287
        %v1289 = vmul.f32 %v386, %v1288
        %v1290 = vmul.f32 %v387, %v1288
        %v1291 = vmul.f32 %v388, %v1288
        %v1292 = vmul.f32 %v389, %v1288
        %s1293 = sld [smem:[#allocation3 + $0x8f]]
        %v1294 = vstv %s1293
        %v1295 = vmul.f32 %v390, %v1294
        %v1296 = vmul.f32 %v391, %v1294
        %v1297 = vmul.f32 %v392, %v1294
        %v1298 = vmul.f32 %v393, %v1294
        %v1299 = vadd.f32 %v1289, %v1295
        %v1300 = vadd.f32 %v1290, %v1296
        %v1301 = vadd.f32 %v1291, %v1297
        %v1302 = vadd.f32 %v1292, %v1298
        %s1303 = sld [smem:[#allocation3 + $0x10f]]
        %v1304 = vstv %s1303
        %v1305 = vmul.f32 %v394, %v1304
        %v1306 = vmul.f32 %v395, %v1304
        %v1307 = vmul.f32 %v396, %v1304
        %v1308 = vmul.f32 %v397, %v1304
        %v1309 = vadd.f32 %v1299, %v1305
        %v1310 = vadd.f32 %v1300, %v1306
        %v1311 = vadd.f32 %v1301, %v1307
        %v1312 = vadd.f32 %v1302, %v1308
        %s1313 = sld [smem:[#allocation3 + $0x18f]]
        %v1314 = vstv %s1313
        %v1315 = vmul.f32 %v398, %v1314
        %v1316 = vmul.f32 %v399, %v1314
        %v1317 = vmul.f32 %v400, %v1314
        %v1318 = vmul.f32 %v401, %v1314
        %v1319 = vadd.f32 %v1309, %v1315
        %v1320 = vadd.f32 %v1310, %v1316
        %v1321 = vadd.f32 %v1311, %v1317
        %v1322 = vadd.f32 %v1312, %v1318
        %s1323 = sld [smem:[#allocation6 + $0xf]]
        %v1324 = vstv %s1323
        %v1325 = vadd.f32 %v1319, %v1324
        %v1326 = vadd.f32 %v1320, %v1324
        %v1327 = vadd.f32 %v1321, %v1324
        %v1328 = vadd.f32 %v1322, %v1324
        %v1329 = vmax.f32 %v1325, 0.0
        %v1330 = vmax.f32 %v1326, 0.0
        %v1331 = vmax.f32 %v1327, 0.0
        %v1332 = vmax.f32 %v1328, 0.0
        %1333 = vst [vmem:[%s369 + $0xf0] sm:$0xff] %v1329
        %1334 = vst [vmem:[%s369 + $0xf8] sm:$0xff] %v1330
        %1335 = vst [vmem:[%s369 + $0x1f0] sm:$0xff] %v1331
        %1336 = vst [vmem:[%s369 + $0x1f8] sm:$0xff] %v1332
        %v1337 = vadd.f32 %v1329, %v1330
        %1338 = vadd.xlane.f32.xlu0 %v1337
        %v1339 = vpop.xlane.xlu0 %1338
        %v1340 = vadd.f32 %v1331, %v1332
        %1341 = vadd.xlane.f32.xlu0 %v1340
        %v1342 = vpop.xlane.xlu0 %1341
        %vm1343 = vcmask 130168
        %1344 = vst.msk [vmem:[#allocation2] sm:$0xff] %vm1343, %v1339
        %1345 = vst.msk [vmem:[#allocation2 + $0x8] sm:$0xff] %vm1343, %v1342
        %v1346 = vld [vmem:[%s3] sm:$0xf]
        %v1347 = vld [vmem:[%s3 + $0x4] sm:$0xf]
        %v1348 = vld [vmem:[%s3 + $0x8] sm:$0xf]
        %v1349 = vld [vmem:[%s3 + $0xc] sm:$0xf]
        %v1350 = vld [vmem:[%s3 + $0x10] sm:$0xf]
        %v1351 = vld [vmem:[%s3 + $0x14] sm:$0xf]
        %v1352 = vld [vmem:[%s3 + $0x18] sm:$0xf]
        %v1353 = vld [vmem:[%s3 + $0x1c] sm:$0xf]
        %v1354 = vld [vmem:[%s3 + $0x20] sm:$0xf]
        %v1355 = vld [vmem:[%s3 + $0x24] sm:$0xf]
        %v1356 = vld [vmem:[%s3 + $0x28] sm:$0xf]
        %v1357 = vld [vmem:[%s3 + $0x2c] sm:$0xf]
        %v1358 = vld [vmem:[%s3 + $0x30] sm:$0xf]
        %v1359 = vld [vmem:[%s3 + $0x34] sm:$0xf]
        %v1360 = vld [vmem:[%s3 + $0x38] sm:$0xf]
        %v1361 = vld [vmem:[%s3 + $0x3c] sm:$0xf]
        %v1362 = vld [vmem:[%s3 + $0x40] sm:$0xf]
        %v1363 = vld [vmem:[%s3 + $0x44] sm:$0xf]
        %v1364 = vld [vmem:[%s3 + $0x48] sm:$0xf]
        %v1365 = vld [vmem:[%s3 + $0x4c] sm:$0xf]
        %v1366 = vld [vmem:[%s3 + $0x50] sm:$0xf]
        %v1367 = vld [vmem:[%s3 + $0x54] sm:$0xf]
        %v1368 = vld [vmem:[%s3 + $0x58] sm:$0xf]
        %v1369 = vld [vmem:[%s3 + $0x5c] sm:$0xf]
        %v1370 = vld [vmem:[%s3 + $0x60] sm:$0xf]
        %v1371 = vld [vmem:[%s3 + $0x64] sm:$0xf]
        %v1372 = vld [vmem:[%s3 + $0x68] sm:$0xf]
        %v1373 = vld [vmem:[%s3 + $0x6c] sm:$0xf]
        %v1374 = vld [vmem:[%s3 + $0x70] sm:$0xf]
        %v1375 = vld [vmem:[%s3 + $0x74] sm:$0xf]
        %v1376 = vld [vmem:[%s3 + $0x78] sm:$0xf]
        %v1377 = vld [vmem:[%s3 + $0x7c] sm:$0xf]
        %v1378 = vld [vmem:[%s3 + $0x80] sm:$0xf]
        %v1379 = vld [vmem:[%s3 + $0x84] sm:$0xf]
        %v1380 = vld [vmem:[%s3 + $0x88] sm:$0xf]
        %v1381 = vld [vmem:[%s3 + $0x8c] sm:$0xf]
        %v1382 = vld [vmem:[%s3 + $0x90] sm:$0xf]
        %v1383 = vld [vmem:[%s3 + $0x94] sm:$0xf]
        %v1384 = vld [vmem:[%s3 + $0x98] sm:$0xf]
        %v1385 = vld [vmem:[%s3 + $0x9c] sm:$0xf]
        %v1386 = vld [vmem:[%s3 + $0xa0] sm:$0xf]
        %v1387 = vld [vmem:[%s3 + $0xa4] sm:$0xf]
        %v1388 = vld [vmem:[%s3 + $0xa8] sm:$0xf]
        %v1389 = vld [vmem:[%s3 + $0xac] sm:$0xf]
        %v1390 = vld [vmem:[%s3 + $0xb0] sm:$0xf]
        %v1391 = vld [vmem:[%s3 + $0xb4] sm:$0xf]
        %v1392 = vld [vmem:[%s3 + $0xb8] sm:$0xf]
        %v1393 = vld [vmem:[%s3 + $0xbc] sm:$0xf]
        %v1394 = vld [vmem:[%s3 + $0xc0] sm:$0xf]
        %v1395 = vld [vmem:[%s3 + $0xc4] sm:$0xf]
        %v1396 = vld [vmem:[%s3 + $0xc8] sm:$0xf]
        %v1397 = vld [vmem:[%s3 + $0xcc] sm:$0xf]
        %v1398 = vld [vmem:[%s3 + $0xd0] sm:$0xf]
        %v1399 = vld [vmem:[%s3 + $0xd4] sm:$0xf]
        %v1400 = vld [vmem:[%s3 + $0xd8] sm:$0xf]
        %v1401 = vld [vmem:[%s3 + $0xdc] sm:$0xf]
        %v1402 = vld [vmem:[%s3 + $0xe0] sm:$0xf]
        %v1403 = vld [vmem:[%s3 + $0xe4] sm:$0xf]
        %v1404 = vld [vmem:[%s3 + $0xe8] sm:$0xf]
        %v1405 = vld [vmem:[%s3 + $0xec] sm:$0xf]
        %v1406 = vld [vmem:[%s3 + $0xf0] sm:$0xf]
        %v1407 = vld [vmem:[%s3 + $0xf4] sm:$0xf]
        %v1408 = vld [vmem:[%s3 + $0xf8] sm:$0xf]
        %v1409 = vld [vmem:[%s3 + $0xfc] sm:$0xf]
        %v1410 = vld [vmem:[%s3 + $0x100] sm:$0xf]
        %v1411 = vld [vmem:[%s3 + $0x104] sm:$0xf]
        %v1412 = vld [vmem:[%s3 + $0x108] sm:$0xf]
        %v1413 = vld [vmem:[%s3 + $0x10c] sm:$0xf]
        %v1414 = vld [vmem:[%s3 + $0x110] sm:$0xf]
        %v1415 = vld [vmem:[%s3 + $0x114] sm:$0xf]
        %v1416 = vld [vmem:[%s3 + $0x118] sm:$0xf]
        %v1417 = vld [vmem:[%s3 + $0x11c] sm:$0xf]
        %v1418 = vld [vmem:[%s3 + $0x120] sm:$0xf]
        %v1419 = vld [vmem:[%s3 + $0x124] sm:$0xf]
        %v1420 = vld [vmem:[%s3 + $0x128] sm:$0xf]
        %v1421 = vld [vmem:[%s3 + $0x12c] sm:$0xf]
        %v1422 = vld [vmem:[%s3 + $0x130] sm:$0xf]
        %v1423 = vld [vmem:[%s3 + $0x134] sm:$0xf]
        %v1424 = vld [vmem:[%s3 + $0x138] sm:$0xf]
        %v1425 = vld [vmem:[%s3 + $0x13c] sm:$0xf]
        %v1426 = vld [vmem:[%s3 + $0x140] sm:$0xf]
        %v1427 = vld [vmem:[%s3 + $0x144] sm:$0xf]
        %v1428 = vld [vmem:[%s3 + $0x148] sm:$0xf]
        %v1429 = vld [vmem:[%s3 + $0x14c] sm:$0xf]
        %v1430 = vld [vmem:[%s3 + $0x150] sm:$0xf]
        %v1431 = vld [vmem:[%s3 + $0x154] sm:$0xf]
        %v1432 = vld [vmem:[%s3 + $0x158] sm:$0xf]
        %v1433 = vld [vmem:[%s3 + $0x15c] sm:$0xf]
        %v1434 = vld [vmem:[%s3 + $0x160] sm:$0xf]
        %v1435 = vld [vmem:[%s3 + $0x164] sm:$0xf]
        %v1436 = vld [vmem:[%s3 + $0x168] sm:$0xf]
        %v1437 = vld [vmem:[%s3 + $0x16c] sm:$0xf]
        %v1438 = vld [vmem:[%s3 + $0x170] sm:$0xf]
        %v1439 = vld [vmem:[%s3 + $0x174] sm:$0xf]
        %v1440 = vld [vmem:[%s3 + $0x178] sm:$0xf]
        %v1441 = vld [vmem:[%s3 + $0x17c] sm:$0xf]
        %v1442 = vld [vmem:[%s3 + $0x180] sm:$0xf]
        %v1443 = vld [vmem:[%s3 + $0x184] sm:$0xf]
        %v1444 = vld [vmem:[%s3 + $0x188] sm:$0xf]
        %v1445 = vld [vmem:[%s3 + $0x18c] sm:$0xf]
        %v1446 = vld [vmem:[%s3 + $0x190] sm:$0xf]
        %v1447 = vld [vmem:[%s3 + $0x194] sm:$0xf]
        %v1448 = vld [vmem:[%s3 + $0x198] sm:$0xf]
        %v1449 = vld [vmem:[%s3 + $0x19c] sm:$0xf]
        %v1450 = vld [vmem:[%s3 + $0x1a0] sm:$0xf]
        %v1451 = vld [vmem:[%s3 + $0x1a4] sm:$0xf]
        %v1452 = vld [vmem:[%s3 + $0x1a8] sm:$0xf]
        %v1453 = vld [vmem:[%s3 + $0x1ac] sm:$0xf]
        %v1454 = vld [vmem:[%s3 + $0x1b0] sm:$0xf]
        %v1455 = vld [vmem:[%s3 + $0x1b4] sm:$0xf]
        %v1456 = vld [vmem:[%s3 + $0x1b8] sm:$0xf]
        %v1457 = vld [vmem:[%s3 + $0x1bc] sm:$0xf]
        %v1458 = vld [vmem:[%s3 + $0x1c0] sm:$0xf]
        %v1459 = vld [vmem:[%s3 + $0x1c4] sm:$0xf]
        %v1460 = vld [vmem:[%s3 + $0x1c8] sm:$0xf]
        %v1461 = vld [vmem:[%s3 + $0x1cc] sm:$0xf]
        %v1462 = vld [vmem:[%s3 + $0x1d0] sm:$0xf]
        %v1463 = vld [vmem:[%s3 + $0x1d4] sm:$0xf]
        %v1464 = vld [vmem:[%s3 + $0x1d8] sm:$0xf]
        %v1465 = vld [vmem:[%s3 + $0x1dc] sm:$0xf]
        %v1466 = vld [vmem:[%s3 + $0x1e0] sm:$0xf]
        %v1467 = vld [vmem:[%s3 + $0x1e4] sm:$0xf]
        %v1468 = vld [vmem:[%s3 + $0x1e8] sm:$0xf]
        %v1469 = vld [vmem:[%s3 + $0x1ec] sm:$0xf]
        %v1470 = vld [vmem:[%s3 + $0x1f0] sm:$0xf]
        %v1471 = vld [vmem:[%s3 + $0x1f4] sm:$0xf]
        %v1472 = vld [vmem:[%s3 + $0x1f8] sm:$0xf]
        %v1473 = vld [vmem:[%s3 + $0x1fc] sm:$0xf]
        %v1474 = vld [vmem:[#allocation8] sm:$0x1]
        %v1476 = vlaneseq
        %v1477 = vshrl.u32 %v1476, 7
        %v1478 = vsub.s32 0, %v1477
        %v1479 = vrot.slane %v1474, %v1478
        %v1489 = vunpack.c.l.b16 %v378
        %v1490 = vunpack.c.h.b16 %v378
        %v1491 = vunpack.c.l.b16 %v379
        %v1492 = vunpack.c.h.b16 %v379
        %v1493 = vunpack.c.l.b16 %v380
        %v1494 = vunpack.c.h.b16 %v380
        %v1495 = vunpack.c.l.b16 %v381
        %v1496 = vunpack.c.h.b16 %v381
        %v1497 = vunpack.c.l.b16 %v382
        %v1498 = vunpack.c.h.b16 %v382
        %v1499 = vunpack.c.l.b16 %v383
        %v1500 = vunpack.c.h.b16 %v383
        %v1501 = vunpack.c.l.b16 %v384
        %v1502 = vunpack.c.h.b16 %v384
        %v1503 = vunpack.c.l.b16 %v385
        %v1504 = vunpack.c.h.b16 %v385
        %v1505 = vpack.c.b16 %v1497, %v1489
        %v1506 = vpack.c.b16 %v1498, %v1490
        %v1507 = vpack.c.b16 %v1499, %v1491
        %v1508 = vpack.c.b16 %v1500, %v1492
        %v1509 = vpack.c.b16 %v1501, %v1493
        %v1510 = vpack.c.b16 %v1502, %v1494
        %v1511 = vpack.c.b16 %v1503, %v1495
        %v1512 = vpack.c.b16 %v1504, %v1496
        %v1649 = vunpack.c.l.b16 %v1346
        %v1650 = vunpack.c.l.b16 %v1347
        %v1651 = vunpack.c.l.b16 %v1348
        %v1652 = vunpack.c.l.b16 %v1349
        %v1653 = vunpack.c.l.b16 %v1350
        %v1654 = vunpack.c.l.b16 %v1351
        %v1655 = vunpack.c.l.b16 %v1352
        %v1656 = vunpack.c.l.b16 %v1353
        %v1657 = vunpack.c.l.b16 %v1354
        %v1658 = vunpack.c.l.b16 %v1355
        %v1659 = vunpack.c.l.b16 %v1356
        %v1660 = vunpack.c.l.b16 %v1357
        %v1661 = vunpack.c.l.b16 %v1358
        %v1662 = vunpack.c.l.b16 %v1359
        %v1663 = vunpack.c.l.b16 %v1360
        %v1664 = vunpack.c.l.b16 %v1361
        %v1665 = vunpack.c.l.b16 %v1362
        %v1666 = vunpack.c.l.b16 %v1363
        %v1667 = vunpack.c.l.b16 %v1364
        %v1668 = vunpack.c.l.b16 %v1365
        %v1669 = vunpack.c.l.b16 %v1366
        %v1670 = vunpack.c.l.b16 %v1367
        %v1671 = vunpack.c.l.b16 %v1368
        %v1672 = vunpack.c.l.b16 %v1369
        %v1673 = vunpack.c.l.b16 %v1370
        %v1674 = vunpack.c.l.b16 %v1371
        %v1675 = vunpack.c.l.b16 %v1372
        %v1676 = vunpack.c.l.b16 %v1373
        %v1677 = vunpack.c.l.b16 %v1374
        %v1678 = vunpack.c.l.b16 %v1375
        %v1679 = vunpack.c.l.b16 %v1376
        %v1680 = vunpack.c.l.b16 %v1377
        %v1681 = vunpack.c.l.b16 %v1378
        %v1682 = vunpack.c.l.b16 %v1379
        %v1683 = vunpack.c.l.b16 %v1380
        %v1684 = vunpack.c.l.b16 %v1381
        %v1685 = vunpack.c.l.b16 %v1382
        %v1686 = vunpack.c.l.b16 %v1383
        %v1687 = vunpack.c.l.b16 %v1384
        %v1688 = vunpack.c.l.b16 %v1385
        %v1689 = vunpack.c.l.b16 %v1386
        %v1690 = vunpack.c.l.b16 %v1387
        %v1691 = vunpack.c.l.b16 %v1388
        %v1692 = vunpack.c.l.b16 %v1389
        %v1693 = vunpack.c.l.b16 %v1390
        %v1694 = vunpack.c.l.b16 %v1391
        %v1695 = vunpack.c.l.b16 %v1392
        %v1696 = vunpack.c.l.b16 %v1393
        %v1697 = vunpack.c.l.b16 %v1394
        %v1698 = vunpack.c.l.b16 %v1395
        %v1699 = vunpack.c.l.b16 %v1396
        %v1700 = vunpack.c.l.b16 %v1397
        %v1701 = vunpack.c.l.b16 %v1398
        %v1702 = vunpack.c.l.b16 %v1399
        %v1703 = vunpack.c.l.b16 %v1400
        %v1704 = vunpack.c.l.b16 %v1401
        %v1705 = vunpack.c.l.b16 %v1402
        %v1706 = vunpack.c.l.b16 %v1403
        %v1707 = vunpack.c.l.b16 %v1404
        %v1708 = vunpack.c.l.b16 %v1405
        %v1709 = vunpack.c.l.b16 %v1406
        %v1710 = vunpack.c.l.b16 %v1407
        %v1711 = vunpack.c.l.b16 %v1408
        %v1712 = vunpack.c.l.b16 %v1409
        %v1713 = vunpack.c.l.b16 %v1410
        %v1714 = vunpack.c.l.b16 %v1411
        %v1715 = vunpack.c.l.b16 %v1412
        %v1716 = vunpack.c.l.b16 %v1413
        %v1717 = vunpack.c.l.b16 %v1414
        %v1718 = vunpack.c.l.b16 %v1415
        %v1719 = vunpack.c.l.b16 %v1416
        %v1720 = vunpack.c.l.b16 %v1417
        %v1721 = vunpack.c.l.b16 %v1418
        %v1722 = vunpack.c.l.b16 %v1419
        %v1723 = vunpack.c.l.b16 %v1420
        %v1724 = vunpack.c.l.b16 %v1421
        %v1725 = vunpack.c.l.b16 %v1422
        %v1726 = vunpack.c.l.b16 %v1423
        %v1727 = vunpack.c.l.b16 %v1424
        %v1728 = vunpack.c.l.b16 %v1425
        %v1729 = vunpack.c.l.b16 %v1426
        %v1730 = vunpack.c.l.b16 %v1427
        %v1731 = vunpack.c.l.b16 %v1428
        %v1732 = vunpack.c.l.b16 %v1429
        %v1733 = vunpack.c.l.b16 %v1430
        %v1734 = vunpack.c.l.b16 %v1431
        %v1735 = vunpack.c.l.b16 %v1432
        %v1736 = vunpack.c.l.b16 %v1433
        %v1737 = vunpack.c.l.b16 %v1434
        %v1738 = vunpack.c.l.b16 %v1435
        %v1739 = vunpack.c.l.b16 %v1436
        %v1740 = vunpack.c.l.b16 %v1437
        %v1741 = vunpack.c.l.b16 %v1438
        %v1742 = vunpack.c.l.b16 %v1439
        %v1743 = vunpack.c.l.b16 %v1440
        %v1744 = vunpack.c.l.b16 %v1441
        %v1745 = vunpack.c.l.b16 %v1442
        %v1746 = vunpack.c.l.b16 %v1443
        %v1747 = vunpack.c.l.b16 %v1444
        %v1748 = vunpack.c.l.b16 %v1445
        %v1749 = vunpack.c.l.b16 %v1446
        %v1750 = vunpack.c.l.b16 %v1447
        %v1751 = vunpack.c.l.b16 %v1448
        %v1752 = vunpack.c.l.b16 %v1449
        %v1753 = vunpack.c.l.b16 %v1450
        %v1754 = vunpack.c.l.b16 %v1451
        %v1755 = vunpack.c.l.b16 %v1452
        %v1756 = vunpack.c.l.b16 %v1453
        %v1757 = vunpack.c.l.b16 %v1454
        %v1758 = vunpack.c.l.b16 %v1455
        %v1759 = vunpack.c.l.b16 %v1456
        %v1760 = vunpack.c.l.b16 %v1457
        %v1761 = vunpack.c.l.b16 %v1458
        %v1762 = vunpack.c.l.b16 %v1459
        %v1763 = vunpack.c.l.b16 %v1460
        %v1764 = vunpack.c.l.b16 %v1461
        %v1765 = vunpack.c.l.b16 %v1462
        %v1766 = vunpack.c.l.b16 %v1463
        %v1767 = vunpack.c.l.b16 %v1464
        %v1768 = vunpack.c.l.b16 %v1465
        %v1769 = vunpack.c.l.b16 %v1466
        %v1770 = vunpack.c.l.b16 %v1467
        %v1771 = vunpack.c.l.b16 %v1468
        %v1772 = vunpack.c.l.b16 %v1469
        %v1773 = vunpack.c.l.b16 %v1470
        %v1774 = vunpack.c.l.b16 %v1471
        %v1775 = vunpack.c.l.b16 %v1472
        %v1776 = vunpack.c.l.b16 %v1473
        %v1777 = vpack.c.b16 %v1650, %v1649
        %v1778 = vpack.c.b16 %v1652, %v1651
        %v1779 = vpack.c.b16 %v1654, %v1653
        %v1780 = vpack.c.b16 %v1656, %v1655
        %v1781 = vpack.c.b16 %v1658, %v1657
        %v1782 = vpack.c.b16 %v1660, %v1659
        %v1783 = vpack.c.b16 %v1662, %v1661
        %v1784 = vpack.c.b16 %v1664, %v1663
        %v1785 = vpack.c.b16 %v1666, %v1665
        %v1786 = vpack.c.b16 %v1668, %v1667
        %v1787 = vpack.c.b16 %v1670, %v1669
        %v1788 = vpack.c.b16 %v1672, %v1671
        %v1789 = vpack.c.b16 %v1674, %v1673
        %v1790 = vpack.c.b16 %v1676, %v1675
        %v1791 = vpack.c.b16 %v1678, %v1677
        %v1792 = vpack.c.b16 %v1680, %v1679
        %v1793 = vpack.c.b16 %v1682, %v1681
        %v1794 = vpack.c.b16 %v1684, %v1683
        %v1795 = vpack.c.b16 %v1686, %v1685
        %v1796 = vpack.c.b16 %v1688, %v1687
        %v1797 = vpack.c.b16 %v1690, %v1689
        %v1798 = vpack.c.b16 %v1692, %v1691
        %v1799 = vpack.c.b16 %v1694, %v1693
        %v1800 = vpack.c.b16 %v1696, %v1695
        %v1801 = vpack.c.b16 %v1698, %v1697
        %v1802 = vpack.c.b16 %v1700, %v1699
        %v1803 = vpack.c.b16 %v1702, %v1701
        %v1804 = vpack.c.b16 %v1704, %v1703
        %v1805 = vpack.c.b16 %v1706, %v1705
        %v1806 = vpack.c.b16 %v1708, %v1707
        %v1807 = vpack.c.b16 %v1710, %v1709
        %v1808 = vpack.c.b16 %v1712, %v1711
        %v1809 = vpack.c.b16 %v1714, %v1713
        %v1810 = vpack.c.b16 %v1716, %v1715
        %v1811 = vpack.c.b16 %v1718, %v1717
        %v1812 = vpack.c.b16 %v1720, %v1719
        %v1813 = vpack.c.b16 %v1722, %v1721
        %v1814 = vpack.c.b16 %v1724, %v1723
        %v1815 = vpack.c.b16 %v1726, %v1725
        %v1816 = vpack.c.b16 %v1728, %v1727
        %v1817 = vpack.c.b16 %v1730, %v1729
        %v1818 = vpack.c.b16 %v1732, %v1731
        %v1819 = vpack.c.b16 %v1734, %v1733
        %v1820 = vpack.c.b16 %v1736, %v1735
        %v1821 = vpack.c.b16 %v1738, %v1737
        %v1822 = vpack.c.b16 %v1740, %v1739
        %v1823 = vpack.c.b16 %v1742, %v1741
        %v1824 = vpack.c.b16 %v1744, %v1743
        %v1825 = vpack.c.b16 %v1746, %v1745
        %v1826 = vpack.c.b16 %v1748, %v1747
        %v1827 = vpack.c.b16 %v1750, %v1749
        %v1828 = vpack.c.b16 %v1752, %v1751
        %v1829 = vpack.c.b16 %v1754, %v1753
        %v1830 = vpack.c.b16 %v1756, %v1755
        %v1831 = vpack.c.b16 %v1758, %v1757
        %v1832 = vpack.c.b16 %v1760, %v1759
        %v1833 = vpack.c.b16 %v1762, %v1761
        %v1834 = vpack.c.b16 %v1764, %v1763
        %v1835 = vpack.c.b16 %v1766, %v1765
        %v1836 = vpack.c.b16 %v1768, %v1767
        %v1837 = vpack.c.b16 %v1770, %v1769
        %v1838 = vpack.c.b16 %v1772, %v1771
        %v1839 = vpack.c.b16 %v1774, %v1773
        %v1840 = vpack.c.b16 %v1776, %v1775
        %1905 = vmatprep.subr.bf16.mxu0 0
        %1906 = vmatpush1.bf16.msra.mxu0 %v1777
        %1907 = vmatprep.subr.bf16.mxu0 0
        %1908 = vmatpush1.bf16.msra.mxu0 %v1778
        %1909 = vmatprep.subr.bf16.mxu0 0
        %1910 = vmatpush1.bf16.msra.mxu0 %v1779
        %1911 = vmatprep.subr.bf16.mxu0 0
        %1912 = vmatpush1.bf16.msra.mxu0 %v1780
        %1913 = vmatprep.subr.bf16.mxu0 0
        %1914 = vmatpush1.bf16.msra.mxu0 %v1781
        %1915 = vmatprep.subr.bf16.mxu0 0
        %1916 = vmatpush1.bf16.msra.mxu0 %v1782
        %1917 = vmatprep.subr.bf16.mxu0 0
        %1918 = vmatpush1.bf16.msra.mxu0 %v1783
        %1919 = vmatprep.subr.bf16.mxu0 0
        %1920 = vmatpush1.bf16.msra.mxu0 %v1784
        %1921 = vmatprep.subr.bf16.mxu0 0
        %1922 = vmatpush1.bf16.msra.mxu0 %v1785
        %1923 = vmatprep.subr.bf16.mxu0 0
        %1924 = vmatpush1.bf16.msra.mxu0 %v1786
        %1925 = vmatprep.subr.bf16.mxu0 0
        %1926 = vmatpush1.bf16.msra.mxu0 %v1787
        %1927 = vmatprep.subr.bf16.mxu0 0
        %1928 = vmatpush1.bf16.msra.mxu0 %v1788
        %1929 = vmatprep.subr.bf16.mxu0 0
        %1930 = vmatpush1.bf16.msra.mxu0 %v1789
        %1931 = vmatprep.subr.bf16.mxu0 0
        %1932 = vmatpush1.bf16.msra.mxu0 %v1790
        %1933 = vmatprep.subr.bf16.mxu0 0
        %1934 = vmatpush1.bf16.msra.mxu0 %v1791
        %1935 = vmatprep.subr.bf16.mxu0 0
        %1936 = vmatpush1.bf16.msra.mxu0 %v1792
        %1937 = vmatprep.mubr.bf16.mxu0 %v1506
        %1938 = vmatmul.mubr.bf16.gmra.mrb[0].mxu0 %v1505
        %v1939 = vpop.f32.mrb[0].mxu0
        %v1940 = vadd.f32 %v1479, %v1939
        %v1941 = vpop.f32.mrb[0].mxu0
        %v1942 = vpop.f32.mrb[0].mxu0
        %v1943 = vadd.f32 %v1479, %v1942
        %v1944 = vpop.f32.mrb[0].mxu0
        %1945 = vdwg.mxu0
        %1946 = vmatprep.subr.bf16.mxu0 0
        %1947 = vmatpush1.bf16.msra.mxu0 %v1793
        %1948 = vmatprep.subr.bf16.mxu0 0
        %1949 = vmatpush1.bf16.msra.mxu0 %v1794
        %1950 = vmatprep.subr.bf16.mxu0 0
        %1951 = vmatpush1.bf16.msra.mxu0 %v1795
        %1952 = vmatprep.subr.bf16.mxu0 0
        %1953 = vmatpush1.bf16.msra.mxu0 %v1796
        %1954 = vmatprep.subr.bf16.mxu0 0
        %1955 = vmatpush1.bf16.msra.mxu0 %v1797
        %1956 = vmatprep.subr.bf16.mxu0 0
        %1957 = vmatpush1.bf16.msra.mxu0 %v1798
        %1958 = vmatprep.subr.bf16.mxu0 0
        %1959 = vmatpush1.bf16.msra.mxu0 %v1799
        %1960 = vmatprep.subr.bf16.mxu0 0
        %1961 = vmatpush1.bf16.msra.mxu0 %v1800
        %1962 = vmatprep.subr.bf16.mxu0 0
        %1963 = vmatpush1.bf16.msra.mxu0 %v1801
        %1964 = vmatprep.subr.bf16.mxu0 0
        %1965 = vmatpush1.bf16.msra.mxu0 %v1802
        %1966 = vmatprep.subr.bf16.mxu0 0
        %1967 = vmatpush1.bf16.msra.mxu0 %v1803
        %1968 = vmatprep.subr.bf16.mxu0 0
        %1969 = vmatpush1.bf16.msra.mxu0 %v1804
        %1970 = vmatprep.subr.bf16.mxu0 0
        %1971 = vmatpush1.bf16.msra.mxu0 %v1805
        %1972 = vmatprep.subr.bf16.mxu0 0
        %1973 = vmatpush1.bf16.msra.mxu0 %v1806
        %1974 = vmatprep.subr.bf16.mxu0 0
        %1975 = vmatpush1.bf16.msra.mxu0 %v1807
        %1976 = vmatprep.subr.bf16.mxu0 0
        %1977 = vmatpush1.bf16.msra.mxu0 %v1808
        %1978 = vmatprep.mubr.bf16.mxu0 %v1508
        %1979 = vmatmul.mubr.bf16.gmra.mrb[0].mxu0 %v1507
        %v1980 = vpop.f32.mrb[0].mxu0
        %v1981 = vadd.f32 %v1940, %v1980
        %v1982 = vpop.f32.mrb[0].mxu0
        %v1983 = vpop.f32.mrb[0].mxu0
        %v1984 = vadd.f32 %v1943, %v1983
        %v1985 = vpop.f32.mrb[0].mxu0
        %1986 = vdwg.mxu0
        %1987 = vmatprep.subr.bf16.mxu0 0
        %1988 = vmatpush1.bf16.msra.mxu0 %v1809
        %1989 = vmatprep.subr.bf16.mxu0 0
        %1990 = vmatpush1.bf16.msra.mxu0 %v1810
        %1991 = vmatprep.subr.bf16.mxu0 0
        %1992 = vmatpush1.bf16.msra.mxu0 %v1811
        %1993 = vmatprep.subr.bf16.mxu0 0
        %1994 = vmatpush1.bf16.msra.mxu0 %v1812
        %1995 = vmatprep.subr.bf16.mxu0 0
        %1996 = vmatpush1.bf16.msra.mxu0 %v1813
        %1997 = vmatprep.subr.bf16.mxu0 0
        %1998 = vmatpush1.bf16.msra.mxu0 %v1814
        %1999 = vmatprep.subr.bf16.mxu0 0
        %2000 = vmatpush1.bf16.msra.mxu0 %v1815
        %2001 = vmatprep.subr.bf16.mxu0 0
        %2002 = vmatpush1.bf16.msra.mxu0 %v1816
        %2003 = vmatprep.subr.bf16.mxu0 0
        %2004 = vmatpush1.bf16.msra.mxu0 %v1817
        %2005 = vmatprep.subr.bf16.mxu0 0
        %2006 = vmatpush1.bf16.msra.mxu0 %v1818
        %2007 = vmatprep.subr.bf16.mxu0 0
        %2008 = vmatpush1.bf16.msra.mxu0 %v1819
        %2009 = vmatprep.subr.bf16.mxu0 0
        %2010 = vmatpush1.bf16.msra.mxu0 %v1820
        %2011 = vmatprep.subr.bf16.mxu0 0
        %2012 = vmatpush1.bf16.msra.mxu0 %v1821
        %2013 = vmatprep.subr.bf16.mxu0 0
        %2014 = vmatpush1.bf16.msra.mxu0 %v1822
        %2015 = vmatprep.subr.bf16.mxu0 0
        %2016 = vmatpush1.bf16.msra.mxu0 %v1823
        %2017 = vmatprep.subr.bf16.mxu0 0
        %2018 = vmatpush1.bf16.msra.mxu0 %v1824
        %2019 = vmatprep.mubr.bf16.mxu0 %v1510
        %2020 = vmatmul.mubr.bf16.gmra.mrb[0].mxu0 %v1509
        %v2021 = vpop.f32.mrb[0].mxu0
        %v2022 = vadd.f32 %v1981, %v2021
        %v2023 = vpop.f32.mrb[0].mxu0
        %v2024 = vpop.f32.mrb[0].mxu0
        %v2025 = vadd.f32 %v1984, %v2024
        %v2026 = vpop.f32.mrb[0].mxu0
        %2027 = vdwg.mxu0
        %2028 = vmatprep.subr.bf16.mxu0 0
        %2029 = vmatpush1.bf16.msra.mxu0 %v1825
        %2030 = vmatprep.subr.bf16.mxu0 0
        %2031 = vmatpush1.bf16.msra.mxu0 %v1826
        %2032 = vmatprep.subr.bf16.mxu0 0
        %2033 = vmatpush1.bf16.msra.mxu0 %v1827
        %2034 = vmatprep.subr.bf16.mxu0 0
        %2035 = vmatpush1.bf16.msra.mxu0 %v1828
        %2036 = vmatprep.subr.bf16.mxu0 0
        %2037 = vmatpush1.bf16.msra.mxu0 %v1829
        %2038 = vmatprep.subr.bf16.mxu0 0
        %2039 = vmatpush1.bf16.msra.mxu0 %v1830
        %2040 = vmatprep.subr.bf16.mxu0 0
        %2041 = vmatpush1.bf16.msra.mxu0 %v1831
        %2042 = vmatprep.subr.bf16.mxu0 0
        %2043 = vmatpush1.bf16.msra.mxu0 %v1832
        %2044 = vmatprep.subr.bf16.mxu0 0
        %2045 = vmatpush1.bf16.msra.mxu0 %v1833
        %2046 = vmatprep.subr.bf16.mxu0 0
        %2047 = vmatpush1.bf16.msra.mxu0 %v1834
        %2048 = vmatprep.subr.bf16.mxu0 0
        %2049 = vmatpush1.bf16.msra.mxu0 %v1835
        %2050 = vmatprep.subr.bf16.mxu0 0
        %2051 = vmatpush1.bf16.msra.mxu0 %v1836
        %2052 = vmatprep.subr.bf16.mxu0 0
        %2053 = vmatpush1.bf16.msra.mxu0 %v1837
        %2054 = vmatprep.subr.bf16.mxu0 0
        %2055 = vmatpush1.bf16.msra.mxu0 %v1838
        %2056 = vmatprep.subr.bf16.mxu0 0
        %2057 = vmatpush1.bf16.msra.mxu0 %v1839
        %2058 = vmatprep.subr.bf16.mxu0 0
        %2059 = vmatpush1.bf16.msra.mxu0 %v1840
        %2060 = vmatprep.mubr.bf16.mxu0 %v1512
        %2061 = vmatmul.mubr.bf16.gmra.mrb[0].mxu0 %v1511
        %v2062 = vpop.f32.mrb[0].mxu0
        %v2063 = vadd.f32 %v2022, %v2062
        %v2064 = vpop.f32.mrb[0].mxu0
        %v2065 = vpop.f32.mrb[0].mxu0
        %v2066 = vadd.f32 %v2025, %v2065
        %v2067 = vpop.f32.mrb[0].mxu0
        %2068 = vdwg.mxu0
        %v2069 = vmax.f32 %v2063, 0.0
        %v2070 = vmax.f32 %v2066, 0.0
        %v2071 = vpack.c.bf16 %v2070, %v2069
        %v2072 = vld [vmem:[%s5] sm:$0xf]
        %v2073 = vld [vmem:[%s5 + $0x4] sm:$0xf]
        %v2074 = vld [vmem:[%s5 + $0x8] sm:$0xf]
        %v2075 = vld [vmem:[%s5 + $0xc] sm:$0xf]
        %v2076 = vld [vmem:[#allocation9] sm:$0x1]
        %v2078 = vlaneseq
        %v2079 = vshrl.u32 %v2078, 7
        %v2080 = vsub.s32 0, %v2079
        %v2081 = vrot.slane %v2076, %v2080
        %v2087 = vunpack.c.l.b16 %v2072
        %v2088 = vunpack.c.l.b16 %v2073
        %v2089 = vunpack.c.l.b16 %v2074
        %v2090 = vunpack.c.l.b16 %v2075
        %v2091 = vpack.c.b16 %v2088, %v2087
        %v2092 = vpack.c.b16 %v2090, %v2089
        %vm2095 = vcmask 261120
        %v2097 = vsel %vm2095, %v2071, 0
        %2099 = vmatprep.subr.bf16.mxu0 0
        %2100 = vmatpush1.bf16.msra.mxu0 %v2091
        %2101 = vmatprep.subr.bf16.mxu0 0
        %2102 = vmatpush1.bf16.msra.mxu0 %v2092
        %2103 = vmatprep.subr.bf16.mxu0 0
        %2104 = vmatpush1.bf16.msra.mxu0 0
        %2105 = vmatprep.subr.bf16.mxu0 0
        %2106 = vmatpush1.bf16.msra.mxu0 0
        %2107 = vmatprep.subr.bf16.mxu0 0
        %2108 = vmatpush1.bf16.msra.mxu0 0
        %2109 = vmatprep.subr.bf16.mxu0 0
        %2110 = vmatpush1.bf16.msra.mxu0 0
        %2111 = vmatprep.subr.bf16.mxu0 0
        %2112 = vmatpush1.bf16.msra.mxu0 0
        %2113 = vmatprep.subr.bf16.mxu0 0
        %2114 = vmatpush1.bf16.msra.mxu0 0
        %2115 = vmatprep.subr.bf16.mxu0 0
        %2116 = vmatpush1.bf16.msra.mxu0 0
        %2117 = vmatprep.subr.bf16.mxu0 0
        %2118 = vmatpush1.bf16.msra.mxu0 0
        %2119 = vmatprep.subr.bf16.mxu0 0
        %2120 = vmatpush1.bf16.msra.mxu0 0
        %2121 = vmatprep.subr.bf16.mxu0 0
        %2122 = vmatpush1.bf16.msra.mxu0 0
        %2123 = vmatprep.subr.bf16.mxu0 0
        %2124 = vmatpush1.bf16.msra.mxu0 0
        %2125 = vmatprep.subr.bf16.mxu0 0
        %2126 = vmatpush1.bf16.msra.mxu0 0
        %2127 = vmatprep.subr.bf16.mxu0 0
        %2128 = vmatpush1.bf16.msra.mxu0 0
        %2129 = vmatprep.subr.bf16.mxu0 0
        %2130 = vmatpush1.bf16.msra.mxu0 0
        %2131 = vmatprep.mubr.bf16.mxu0 0
        %2132 = vmatmul.mubr.bf16.gmra.mrb[0].mxu0 %v2097
        %v2133 = vpop.f32.mrb[0].mxu0
        %v2134 = vadd.f32 %v2081, %v2133
        %v2135 = vpop.f32.mrb[0].mxu0
        %v2136 = vpop.f32.mrb[0].mxu0
        %v2137 = vadd.f32 %v2081, %v2136
        %v2138 = vpop.f32.mrb[0].mxu0
        %2139 = vdwg.mxu0
        %v2140 = vmax.f32 %v2134, 0.0
        %v2141 = vmax.f32 %v2137, 0.0
        %v2142 = vld [vmem:[#allocation2] sm:$0xff]
        %v2143 = vld [vmem:[#allocation2 + $0x8] sm:$0xff]
        %v2144 = vmul.f32 %v2142, 0.00390625
        %v2145 = vmul.f32 %v2143, 0.00390625
        %v2146 = vadd.f32 %v2140, %v2144
        %v2147 = vadd.f32 %v2141, %v2145
        %vm2148 = vcmask 130048
        %2149 = vst.msk [vmem:[%s375] sm:$0xff] %vm2148, %v2146
        %2150 = vst.msk [vmem:[%s375 + $0x8] sm:$0xff] %vm2148, %v2147
        %s2151 = smul.u32 2, %s24
        %p2152 = scmp.lt.s32.totalorder %s2151, 3
        %s2153 = scalar_select %p2152, %s2151, 3
        %s2154 = smul.addr %s2153, 32
        %s2155 = smul.addr %s2154, 8
        %s2156 = scalar_lea.vmem %s7, %s2155
        %s2157 = smul.u32 2, %s24
        %p2158 = scmp.lt.s32.totalorder %s2157, 3
        %s2159 = scalar_select %p2158, %s2157, 3
        %s2160 = smul.addr %s2159, 8
        %s2161 = scalar_lea.vmem %s8, %s2160
        // Predicated region
        $region65: #{fast_rcnn_conv_pooling_head.1} parent=47 // pred_check
          %p2162 = pneg %p194
        $region66: #{fast_rcnn_conv_pooling_head.1} parent=47 // pred_check_branch
          %2164 = sbr.rel (%p2162) target = $region68
        $region67: #{fast_rcnn_conv_pooling_head.1} parent=47 // pred_region
          %s2165 = smul.u32 2, %s24
        $region68: #{fast_rcnn_conv_pooling_head.1} parent=47 // pred_fallthru
          _
        // Predicated region
        $region69: #{fast_rcnn_conv_pooling_head.1} parent=47 // pred_check
          %p2166 = pneg %p220
        $region70: #{fast_rcnn_conv_pooling_head.1} parent=47 // pred_check_branch
          %2168 = sbr.rel (%p2166) target = $region72
        $region71: #{fast_rcnn_conv_pooling_head.1} parent=47 // pred_region
          %s2169 = smul.u32 2, %s24
        $region72: #{fast_rcnn_conv_pooling_head.1} parent=47 // pred_fallthru
          _
      $region48: #{fast_rcnn_conv_pooling_head.1} parent=5 // pred_fallthru
        _
      %p2170 = scmp.le.s32.totalorder 2, %s19
      // Predicated region
      $region73: #{fast_rcnn_conv_pooling_head.1} parent=5 // pred_check
        %p2171 = pneg %p2170
      $region74: #{fast_rcnn_conv_pooling_head.1} parent=5 // pred_check_branch
        %2173 = sbr.rel (%p2171) target = $region76
      $region75: #{fast_rcnn_conv_pooling_head.1} parent=5 // pred_region
        %s2174 = ssub.s32 %s19, 2
        // Predicated region
        $region77: #{fast_rcnn_conv_pooling_head.1} parent=75 // pred_check
          %p2175 = pneg %p200
        $region78: #{fast_rcnn_conv_pooling_head.1} parent=75 // pred_check_branch
          %2177 = sbr.rel (%p2175) target = $region80
        $region79: #{fast_rcnn_conv_pooling_head.1} parent=75 // pred_region
          %s2178 = smul.u32 2, %s25
          %p2179 = scmp.lt.s32.totalorder %s2178, 3
          %s2180 = scalar_select %p2179, %s2178, 3
          %s2181 = smul.addr %s2180, 32
          %s2182 = smul.addr %s2181, 8
          %s2183 = scalar_lea.vmem %s7, %s2182
        $region80: #{fast_rcnn_conv_pooling_head.1} parent=75 // pred_fallthru
          _
        // Predicated region
        $region81: #{fast_rcnn_conv_pooling_head.1} parent=75 // pred_check
          %p2184 = pneg %p226
        $region82: #{fast_rcnn_conv_pooling_head.1} parent=75 // pred_check_branch
          %2186 = sbr.rel (%p2184) target = $region84
        $region83: #{fast_rcnn_conv_pooling_head.1} parent=75 // pred_region
          %s2187 = smul.u32 2, %s25
          %p2188 = scmp.lt.s32.totalorder %s2187, 3
          %s2189 = scalar_select %p2188, %s2187, 3
          %s2190 = smul.addr %s2189, 8
          %s2191 = scalar_lea.vmem %s8, %s2190
        $region84: #{fast_rcnn_conv_pooling_head.1} parent=75 // pred_fallthru
          _
      $region76: #{fast_rcnn_conv_pooling_head.1} parent=5 // pred_fallthru
        _
    $region6: #{fast_rcnn_conv_pooling_head.1} parent=1 // loop_footer
      %s23 = sadd.s32 1, %s19
    $region7: #{fast_rcnn_conv_pooling_head.1} parent=1 // loop_footer_branch
      %18 = sbr.rel target = $region3
    $region8: #{fast_rcnn_conv_pooling_head.1} parent=1 // loop_exit
      _
    %2192 = vsyncpa [#allocation4], 1
    %s2193 = scalar_lea.sflag [#allocation4], 1
    %2194 = vsyncpa %s2193, 1
    %2195 = vsyncpa [#allocation10], 1
    %2196 = vsyncpa [#allocation5], 1
    %s2197 = scalar_lea.sflag [#allocation5], 1
    %2198 = vsyncpa %s2197, 1
    %2199 = vsyncpa [#allocation7], 1

</llo_original>
